<compile_context>
chip_gen: v5e
topology: v5e:2x2
jax: 0.10.0
libtpu: 0.0.40
codegen_flags: <defaults>
</compile_context>

<pallas_src>
import jax
import jax.numpy as jnp
from jax.experimental import pallas as pl
from jax.experimental.pallas import tpu as pltpu

# Model hyper-parameters (consistent with the module's forward).
EMBED = 32                 # embed_size
HEADS = 4                  # heads
HEAD_DIM = EMBED // HEADS
FWD_EXP = 2
FF = FWD_EXP * EMBED
NUM_LAYERS = 2
EPS = 1e-5                 # nn.LayerNorm default eps

# rows of the per-layer vector slab (lane-aligned, 128 lanes wide)
_V_BO, _V_G1, _V_BE1, _V_G2, _V_BE2, _V_B2, _V_B1 = 0, 1, 2, 3, 4, 5, 6


def _layer_norm(x, gamma, beta):
    mean = jnp.mean(x, axis=-1, keepdims=True)
    var = jnp.mean((x - mean) ** 2, axis=-1, keepdims=True)
    return (x - mean) * jax.lax.rsqrt(var + EPS) * gamma + beta


def encoder_kernel(x_ref, graph_ref, pad_ref, wqkv_ref, wo_ref, w1_ref, w2_ref,
                   vec_ref, out_ref):
    E, F, H, d = EMBED, FF, HEADS, HEAD_DIM
    B, T = graph_ref.shape[0], graph_ref.shape[1]
    N = B * T
    L = wqkv_ref.shape[0]

    x = x_ref[...]                                            # (B*T, E) token-major activations

    # ---- masks: built once in VMEM, broadcast over heads once (z = h*B + b) ----
    pad_f = pad_ref[...]                                      # (B, T) float 0/1
    pad2d = pad_f[:, :, None] * pad_f[:, None, :]             # bmm outer product, (B, T, T)
    graph_z = jnp.broadcast_to(graph_ref[...][None], (H, B, T, T)).reshape(H * B, T, T)
    pad_z = jnp.broadcast_to(pad2d[None], (H, B, T, T)).reshape(H * B, T, T)

    for l in range(L):                                        # static unroll over layers
        wqkv = wqkv_ref[l]                                    # (H, E, 3d) zero-embedded per head
        wo = wo_ref[l]                                        # (H, d, E)
        w1 = w1_ref[l]                                        # (E, F)
        w2 = w2_ref[l]                                        # (F, E)
        bo = vec_ref[l, _V_BO:_V_BO + 1, 0:E]                 # (1, E)
        g1 = vec_ref[l, _V_G1:_V_G1 + 1, 0:E]
        be1 = vec_ref[l, _V_BE1:_V_BE1 + 1, 0:E]
        g2 = vec_ref[l, _V_G2:_V_G2 + 1, 0:E]
        be2 = vec_ref[l, _V_BE2:_V_BE2 + 1, 0:E]
        b2 = vec_ref[l, _V_B2:_V_B2 + 1, 0:E]
        b1 = vec_ref[l, _V_B1:_V_B1 + 1, 0:F]                 # (1, F)

        # ---- multi-head attention: per-head QKV directly from the (N, E) slab ----
        xh = jnp.broadcast_to(x[None], (H, N, E))             # cheap leading-dim broadcast
        qkv = jnp.einsum('hne,hec->hnc', xh, wqkv,
                         preferred_element_type=jnp.float32)  # (H, N, 3d); q pre-scaled
        qz = qkv[:, :, 0:d].reshape(H * B, T, d)              # z = h*B + b
        kz = qkv[:, :, d:2 * d].reshape(H * B, T, d)
        vz = qkv[:, :, 2 * d:3 * d].reshape(H * B, T, d)

        energy = jnp.einsum('ztd,zsd->zts', qz, kz,
                            preferred_element_type=jnp.float32)   # (H*B, T, T)
        # graph multiply then OVERWRITE padded positions (masked_fill semantics)
        logits = jnp.where(pad_z == 0.0, jnp.float32(-1e20), energy * graph_z)
        m = jnp.max(logits, axis=-1, keepdims=True)
        p = jnp.exp(logits - m)
        attn = p * pl.reciprocal(jnp.sum(p, axis=-1, keepdims=True), approx=True)
        oz = jnp.einsum('zts,zsd->ztd', attn, vz,
                        preferred_element_type=jnp.float32)       # (H*B, T, d)

        # head merge folded into fc_out: batched per-head projection + sum over heads
        proj = jnp.einsum('hnd,hde->hne', oz.reshape(H, N, d), wo,
                          preferred_element_type=jnp.float32)     # (H, N, E)
        attn_out = jnp.sum(proj, axis=0) + bo                     # (N, E)

        # ---- residual + LayerNorm 1 (dropout == identity in eval mode) ----
        x1 = _layer_norm(attn_out + x, g1, be1)

        # ---- feed-forward: Linear -> ReLU -> Linear ----
        h1 = jnp.maximum(jnp.dot(x1, w1, preferred_element_type=jnp.float32) + b1, 0.0)
        ff = jnp.dot(h1, w2, preferred_element_type=jnp.float32) + b2

        # ---- residual + LayerNorm 2 ----
        x = _layer_norm(ff + x1, g2, be2)

    out_ref[...] = x


@jax.jit
def encoder_forward(x, graph_masks, pad_masks, wqkv, wo, w1, w2, vec):
    """MyTransformerEncoder.forward (eval mode) as a single fused Pallas call."""
    B, T, E = x.shape
    graph = graph_masks.astype(jnp.float32)                   # (B, T, T)
    if pad_masks is None:
        pad_full = jnp.ones((B, T), jnp.float32)
    else:
        # single fused cast+pad (prepend the two always-valid CLS-style tokens);
        # the outer product / -1e20 fill / head broadcast all happen in-kernel.
        pad_full = jnp.pad(pad_masks.astype(jnp.float32), ((0, 0), (2, 0)),
                           constant_values=1.0)               # (B, T)

    out2d = pl.pallas_call(
        encoder_kernel,
        out_shape=jax.ShapeDtypeStruct((B * T, E), jnp.float32),
        in_specs=[pl.BlockSpec(memory_space=pltpu.MemorySpace.VMEM)] * 8,
        out_specs=pl.BlockSpec(memory_space=pltpu.MemorySpace.VMEM),
    )(x.reshape(B * T, E), graph, pad_full, wqkv, wo, w1, w2, vec)
    return out2d.reshape(B, T, E)


def init_layer_params(key):
    """Deterministic synthetic weights in PyTorch (out, in) convention."""
    ks = jax.random.split(key, 8)
    d = HEAD_DIM
    return dict(
        wq=jax.random.normal(ks[0], (d, d), jnp.float32) * 0.1,     # Linear(head_dim, head_dim)
        wk=jax.random.normal(ks[1], (d, d), jnp.float32) * 0.1,
        wv=jax.random.normal(ks[2], (d, d), jnp.float32) * 0.1,
        wo=jax.random.normal(ks[3], (EMBED, EMBED), jnp.float32) * 0.1,   # fc_out (out, in)
        bo=jax.random.normal(ks[4], (EMBED,), jnp.float32) * 0.1,
        w1=jax.random.normal(ks[5], (FF, EMBED), jnp.float32) * 0.1,      # Linear(E, F*E)
        b1=jax.random.normal(ks[6], (FF,), jnp.float32) * 0.1,
        w2=jax.random.normal(ks[7], (EMBED, FF), jnp.float32) * 0.1,      # Linear(F*E, E)
        b2=jnp.zeros((EMBED,), jnp.float32),
        g1=jnp.ones((EMBED,), jnp.float32), be1=jnp.zeros((EMBED,), jnp.float32),
        g2=jnp.ones((EMBED,), jnp.float32), be2=jnp.zeros((EMBED,), jnp.float32),
    )


def pack_params(layer_params):
    """Pack weights into per-head, x @ W layouts (no in-kernel weight relayout).

    Returns (wqkv, wo, w1, w2, vec) with shapes
      wqkv: (L, H, E, 3d)  zero-embedded per head, 1/sqrt(E) folded into the q part
      wo  : (L, H, d, E)   fc_out^T split by head-row blocks
      w1  : (L, E, F), w2: (L, F, E)
      vec : (L, 8, 128)    bias / LN vectors, lane-aligned
    """
    d, E, F, H = HEAD_DIM, EMBED, FF, HEADS
    scale = 1.0 / (E ** 0.5)
    wqkv_l, wo_l, w1_l, w2_l, vec_l = [], [], [], [], []
    for p in layer_params:
        per_head = jnp.concatenate([p['wq'].T * scale, p['wk'].T, p['wv'].T], axis=1)  # (d, 3d)
        wqkv = jnp.zeros((H, E, 3 * d), jnp.float32)
        for h in range(H):
            wqkv = wqkv.at[h, h * d:(h + 1) * d, :].set(per_head)
        wo_h = p['wo'].T.reshape(H, d, E)                      # row block h of Wo^T
        vec = jnp.zeros((8, 128), jnp.float32)
        vec = vec.at[_V_BO, 0:E].set(p['bo'])
        vec = vec.at[_V_G1, 0:E].set(p['g1'])
        vec = vec.at[_V_BE1, 0:E].set(p['be1'])
        vec = vec.at[_V_G2, 0:E].set(p['g2'])
        vec = vec.at[_V_BE2, 0:E].set(p['be2'])
        vec = vec.at[_V_B2, 0:E].set(p['b2'])
        vec = vec.at[_V_B1, 0:F].set(p['b1'])
        wqkv_l.append(wqkv)
        wo_l.append(wo_h)
        w1_l.append(p['w1'].T)
        w2_l.append(p['w2'].T)
        vec_l.append(vec)
    return (jnp.stack(wqkv_l), jnp.stack(wo_l), jnp.stack(w1_l),
            jnp.stack(w2_l), jnp.stack(vec_l))


# ---------- pure-JAX reference (faithful to the PyTorch module; correctness only) ----------
def _reference_block(x, graph, pad2d, p):
    B, T, E = x.shape
    H, d = HEADS, HEAD_DIM
    xh = x.reshape(B, T, H, d)
    q = xh @ p['wq'].T
    k = xh @ p['wk'].T
    v = xh @ p['wv'].T
    energy = jnp.einsum('nqhd,nkhd->nhqk', q, k)
    energy = energy * graph[:, None]
    energy = jnp.where(pad2d[:, None] == 0.0, -1e20, energy)
    attn = jax.nn.softmax(energy / (E ** 0.5), axis=-1)
    out = jnp.einsum('nhqk,nkhd->nqhd', attn, v).reshape(B, T, E)
    out = out @ p['wo'].T + p['bo']
    x1 = _layer_norm(out + x, p['g1'], p['be1'])
    ff = jnp.maximum(x1 @ p['w1'].T + p['b1'], 0.0) @ p['w2'].T + p['b2']
    return _layer_norm(ff + x1, p['g2'], p['be2'])


def _reference_encoder(x, graph_masks, pad_masks, layer_params):
    B, T, E = x.shape
    pad_full = jnp.concatenate([jnp.ones((B, 2), dtype=bool), pad_masks.astype(bool)], axis=1)
    fm = pad_full.astype(jnp.float32)
    pad2d = fm[:, :, None] * fm[:, None, :]
    graph = graph_masks.astype(jnp.float32)
    out = x
    for p in layer_params:
        out = _reference_block(out, graph, pad2d, p)
    return out


if __name__ == "__main__":
    B, T = 2, 8
    key = jax.random.PRNGKey(0)
    k_x, k_g, k_p, k_w = jax.random.split(key, 4)

    x = jax.random.normal(k_x, (B, T, EMBED), jnp.float32)
    graph_masks = jax.random.bernoulli(k_g, 0.7, (B, T, T)).astype(jnp.float32)
    pad_masks = jax.random.bernoulli(k_p, 0.8, (B, T - 2))          # bool (B, T-2)

    layer_keys = jax.random.split(k_w, NUM_LAYERS)
    layer_params = [init_layer_params(lk) for lk in layer_keys]
    wqkv, wo, w1, w2, vec = pack_params(layer_params)

    out = encoder_forward(x, graph_masks, pad_masks, wqkv, wo, w1, w2, vec)
    out = jax.block_until_ready(out)

    ref = _reference_encoder(x, graph_masks, pad_masks, layer_params)
    assert out.shape == (B, T, EMBED)
    # tolerance accounts for the approximate EUP reciprocal in the softmax denominator
    assert jnp.allclose(out, ref, atol=1e-3, rtol=1e-3), "mismatch vs reference"

    print("KERNEL_OK")
</pallas_src>

<mosaic_0001>
module attributes {stable_mosaic.version = 11 : i64} {
  func.func @encoder_kernel(%arg0: memref<16x32xf32, #tpu.memory_space<vmem>>, %arg1: memref<2x8x8xf32, #tpu.memory_space<vmem>>, %arg2: memref<2x8xf32, #tpu.memory_space<vmem>>, %arg3: memref<2x4x32x24xf32, #tpu.memory_space<vmem>>, %arg4: memref<2x4x8x32xf32, #tpu.memory_space<vmem>>, %arg5: memref<2x32x64xf32, #tpu.memory_space<vmem>>, %arg6: memref<2x64x32xf32, #tpu.memory_space<vmem>>, %arg7: memref<2x8x128xf32, #tpu.memory_space<vmem>>, %arg8: memref<16x32xf32, #tpu.memory_space<vmem>>) attributes {dimension_semantics = [], scalar_prefetch = 0 : i64, scratch_operands = 0 : i64, tpu.core_type = #tpu.core_type<tc>} {
    %c0 = arith.constant 0 : index
    %c0_0 = arith.constant 0 : index
    %0 = vector.load %arg0[%c0, %c0_0] : memref<16x32xf32, #tpu.memory_space<vmem>>, vector<16x32xf32>
    %c0_1 = arith.constant 0 : index
    %c0_2 = arith.constant 0 : index
    %1 = vector.load %arg2[%c0_1, %c0_2] : memref<2x8xf32, #tpu.memory_space<vmem>>, vector<2x8xf32>
    %2 = vector.shape_cast %1 : vector<2x8xf32> to vector<2x8x1xf32>
    %3 = vector.shape_cast %1 : vector<2x8xf32> to vector<2x1x8xf32>
    %4 = vector.broadcast %2 : vector<2x8x1xf32> to vector<2x8x8xf32>
    %5 = vector.broadcast %3 : vector<2x1x8xf32> to vector<2x8x8xf32>
    %6 = arith.mulf %4, %5 : vector<2x8x8xf32>
    %c0_3 = arith.constant 0 : index
    %c0_4 = arith.constant 0 : index
    %c0_5 = arith.constant 0 : index
    %7 = vector.load %arg1[%c0_3, %c0_4, %c0_5] : memref<2x8x8xf32, #tpu.memory_space<vmem>>, vector<2x8x8xf32>
    %8 = vector.shape_cast %7 : vector<2x8x8xf32> to vector<1x2x8x8xf32>
    %9 = vector.shape_cast %8 : vector<1x2x8x8xf32> to vector<1x2x8x8xf32>
    %10 = vector.broadcast %9 : vector<1x2x8x8xf32> to vector<4x2x8x8xf32>
    %11 = vector.shape_cast %10 : vector<4x2x8x8xf32> to vector<8x8x8xf32>
    %12 = vector.shape_cast %6 : vector<2x8x8xf32> to vector<1x2x8x8xf32>
    %13 = vector.shape_cast %12 : vector<1x2x8x8xf32> to vector<1x2x8x8xf32>
    %14 = vector.broadcast %13 : vector<1x2x8x8xf32> to vector<4x2x8x8xf32>
    %15 = vector.shape_cast %14 : vector<4x2x8x8xf32> to vector<8x8x8xf32>
    %c0_6 = arith.constant 0 : index
    %c0_7 = arith.constant 0 : index
    %c0_8 = arith.constant 0 : index
    %c0_9 = arith.constant 0 : index
    %16 = vector.load %arg3[%c0_6, %c0_7, %c0_8, %c0_9] : memref<2x4x32x24xf32, #tpu.memory_space<vmem>>, vector<1x4x32x24xf32>
    %17 = vector.shape_cast %16 : vector<1x4x32x24xf32> to vector<4x32x24xf32>
    %c0_10 = arith.constant 0 : index
    %c0_11 = arith.constant 0 : index
    %c0_12 = arith.constant 0 : index
    %c0_13 = arith.constant 0 : index
    %18 = vector.load %arg4[%c0_10, %c0_11, %c0_12, %c0_13] : memref<2x4x8x32xf32, #tpu.memory_space<vmem>>, vector<1x4x8x32xf32>
    %19 = vector.shape_cast %18 : vector<1x4x8x32xf32> to vector<4x8x32xf32>
    %c0_14 = arith.constant 0 : index
    %c0_15 = arith.constant 0 : index
    %c0_16 = arith.constant 0 : index
    %20 = vector.load %arg5[%c0_14, %c0_15, %c0_16] : memref<2x32x64xf32, #tpu.memory_space<vmem>>, vector<1x32x64xf32>
    %21 = vector.shape_cast %20 : vector<1x32x64xf32> to vector<32x64xf32>
    %c0_17 = arith.constant 0 : index
    %c0_18 = arith.constant 0 : index
    %c0_19 = arith.constant 0 : index
    %22 = vector.load %arg6[%c0_17, %c0_18, %c0_19] : memref<2x64x32xf32, #tpu.memory_space<vmem>>, vector<1x64x32xf32>
    %23 = vector.shape_cast %22 : vector<1x64x32xf32> to vector<64x32xf32>
    %c0_20 = arith.constant 0 : index
    %c0_21 = arith.constant 0 : index
    %c0_22 = arith.constant 0 : index
    %24 = vector.load %arg7[%c0_20, %c0_21, %c0_22] : memref<2x8x128xf32, #tpu.memory_space<vmem>>, vector<1x1x32xf32>
    %25 = vector.shape_cast %24 : vector<1x1x32xf32> to vector<1x32xf32>
    %c0_23 = arith.constant 0 : index
    %c1 = arith.constant 1 : index
    %c0_24 = arith.constant 0 : index
    %26 = vector.load %arg7[%c0_23, %c1, %c0_24] : memref<2x8x128xf32, #tpu.memory_space<vmem>>, vector<1x1x32xf32>
    %27 = vector.shape_cast %26 : vector<1x1x32xf32> to vector<1x32xf32>
    %c0_25 = arith.constant 0 : index
    %c2 = arith.constant 2 : index
    %c0_26 = arith.constant 0 : index
    %28 = vector.load %arg7[%c0_25, %c2, %c0_26] : memref<2x8x128xf32, #tpu.memory_space<vmem>>, vector<1x1x32xf32>
    %29 = vector.shape_cast %28 : vector<1x1x32xf32> to vector<1x32xf32>
    %c0_27 = arith.constant 0 : index
    %c3 = arith.constant 3 : index
    %c0_28 = arith.constant 0 : index
    %30 = vector.load %arg7[%c0_27, %c3, %c0_28] : memref<2x8x128xf32, #tpu.memory_space<vmem>>, vector<1x1x32xf32>
    %31 = vector.shape_cast %30 : vector<1x1x32xf32> to vector<1x32xf32>
    %c0_29 = arith.constant 0 : index
    %c4 = arith.constant 4 : index
    %c0_30 = arith.constant 0 : index
    %32 = vector.load %arg7[%c0_29, %c4, %c0_30] : memref<2x8x128xf32, #tpu.memory_space<vmem>>, vector<1x1x32xf32>
    %33 = vector.shape_cast %32 : vector<1x1x32xf32> to vector<1x32xf32>
    %c0_31 = arith.constant 0 : index
    %c5 = arith.constant 5 : index
    %c0_32 = arith.constant 0 : index
    %34 = vector.load %arg7[%c0_31, %c5, %c0_32] : memref<2x8x128xf32, #tpu.memory_space<vmem>>, vector<1x1x32xf32>
    %35 = vector.shape_cast %34 : vector<1x1x32xf32> to vector<1x32xf32>
    %c0_33 = arith.constant 0 : index
    %c6 = arith.constant 6 : index
    %c0_34 = arith.constant 0 : index
    %36 = vector.load %arg7[%c0_33, %c6, %c0_34] : memref<2x8x128xf32, #tpu.memory_space<vmem>>, vector<1x1x64xf32>
    %37 = vector.shape_cast %36 : vector<1x1x64xf32> to vector<1x64xf32>
    %38 = vector.shape_cast %0 : vector<16x32xf32> to vector<1x16x32xf32>
    %39 = vector.shape_cast %38 : vector<1x16x32xf32> to vector<1x16x32xf32>
    %40 = vector.broadcast %39 : vector<1x16x32xf32> to vector<4x16x32xf32>
    "tpu.trace_start"() <{level = 10 : i32, message = "hne,hec->hnc"}> : () -> ()
    %cst = arith.constant dense<0.000000e+00> : vector<4x16x24xf32>
    %41 = tpu.matmul %40, %17, %cst {dimension_numbers = #tpu.dot_dimension_numbers<[2], [1], [1], [2], [0, 0, 0, 1, 1, 2], [0], [0]>} : vector<4x16x32xf32>, vector<4x32x24xf32>, vector<4x16x24xf32> -> vector<4x16x24xf32>
    "tpu.trace_stop"() : () -> ()
    %42 = vector.extract_strided_slice %41 {offsets = [0, 0, 0], sizes = [4, 16, 8], strides = [1, 1, 1]} : vector<4x16x24xf32> to vector<4x16x8xf32>
    %43 = vector.shape_cast %42 : vector<4x16x8xf32> to vector<8x8x8xf32>
    %44 = vector.extract_strided_slice %41 {offsets = [0, 0, 8], sizes = [4, 16, 8], strides = [1, 1, 1]} : vector<4x16x24xf32> to vector<4x16x8xf32>
    %45 = vector.shape_cast %44 : vector<4x16x8xf32> to vector<8x8x8xf32>
    %46 = vector.extract_strided_slice %41 {offsets = [0, 0, 16], sizes = [4, 16, 8], strides = [1, 1, 1]} : vector<4x16x24xf32> to vector<4x16x8xf32>
    %47 = vector.shape_cast %46 : vector<4x16x8xf32> to vector<8x8x8xf32>
    "tpu.trace_start"() <{level = 10 : i32, message = "ztd,zsd->zts"}> : () -> ()
    %cst_35 = arith.constant dense<0.000000e+00> : vector<8x8x8xf32>
    %48 = tpu.matmul %43, %45, %cst_35 {dimension_numbers = #tpu.dot_dimension_numbers<[2], [2], [1], [1], [0, 0, 0, 1, 1, 1], [0], [0]>} : vector<8x8x8xf32>, vector<8x8x8xf32>, vector<8x8x8xf32> -> vector<8x8x8xf32>
    %cst_36 = arith.constant 0.000000e+00 : f32
    "tpu.trace_stop"() : () -> ()
    %49 = vector.broadcast %cst_36 : f32 to vector<8x8x8xf32>
    %50 = arith.cmpf oeq, %15, %49 : vector<8x8x8xf32>
    %51 = arith.mulf %48, %11 : vector<8x8x8xf32>
    %cst_37 = arith.constant -1.000000e+20 : f32
    %52 = vector.broadcast %cst_37 : f32 to vector<8x8x8xf32>
    %53 = arith.select %50, %52, %51 : vector<8x8x8xi1>, vector<8x8x8xf32>
    %cst_38 = arith.constant dense<0xFF800000> : vector<8x8xf32>
    %54 = vector.multi_reduction <maximumf>, %53, %cst_38 [2] : vector<8x8x8xf32> to vector<8x8xf32>
    %55 = vector.shape_cast %54 : vector<8x8xf32> to vector<8x8x1xf32>
    %56 = vector.broadcast %55 : vector<8x8x1xf32> to vector<8x8x8xf32>
    %57 = arith.subf %53, %56 : vector<8x8x8xf32>
    %58 = math.exp %57 : vector<8x8x8xf32>
    %cst_39 = arith.constant dense<0.000000e+00> : vector<8x8xf32>
    %59 = vector.multi_reduction <add>, %58, %cst_39 [2] : vector<8x8x8xf32> to vector<8x8xf32>
    %60 = vector.shape_cast %59 : vector<8x8xf32> to vector<8x8x1xf32>
    %61 = tpu.reciprocal %60 {approx = true} : vector<8x8x1xf32> -> vector<8x8x1xf32>
    %62 = vector.broadcast %61 : vector<8x8x1xf32> to vector<8x8x8xf32>
    %63 = arith.mulf %58, %62 : vector<8x8x8xf32>
    "tpu.trace_start"() <{level = 10 : i32, message = "zts,zsd->ztd"}> : () -> ()
    %cst_40 = arith.constant dense<0.000000e+00> : vector<8x8x8xf32>
    %64 = tpu.matmul %63, %47, %cst_40 {dimension_numbers = #tpu.dot_dimension_numbers<[2], [1], [1], [2], [0, 0, 0, 1, 1, 2], [0], [0]>} : vector<8x8x8xf32>, vector<8x8x8xf32>, vector<8x8x8xf32> -> vector<8x8x8xf32>
    "tpu.trace_stop"() : () -> ()
    %65 = vector.shape_cast %64 : vector<8x8x8xf32> to vector<4x16x8xf32>
    "tpu.trace_start"() <{level = 10 : i32, message = "hnd,hde->hne"}> : () -> ()
    %cst_41 = arith.constant dense<0.000000e+00> : vector<4x16x32xf32>
    %66 = tpu.matmul %65, %19, %cst_41 {dimension_numbers = #tpu.dot_dimension_numbers<[2], [1], [1], [2], [0, 0, 0, 1, 1, 2], [0], [0]>} : vector<4x16x8xf32>, vector<4x8x32xf32>, vector<4x16x32xf32> -> vector<4x16x32xf32>
    "tpu.trace_stop"() : () -> ()
    %cst_42 = arith.constant dense<0.000000e+00> : vector<16x32xf32>
    %67 = vector.multi_reduction <add>, %66, %cst_42 [0] : vector<4x16x32xf32> to vector<16x32xf32>
    %68 = vector.broadcast %25 : vector<1x32xf32> to vector<16x32xf32>
    %69 = arith.addf %67, %68 : vector<16x32xf32>
    %70 = arith.addf %69, %0 : vector<16x32xf32>
    %cst_43 = arith.constant dense<0.000000e+00> : vector<16xf32>
    %71 = vector.multi_reduction <add>, %70, %cst_43 [1] : vector<16x32xf32> to vector<16xf32>
    %72 = vector.shape_cast %71 : vector<16xf32> to vector<16x1xf32>
    %cst_44 = arith.constant 3.200000e+01 : f32
    %73 = vector.broadcast %cst_44 : f32 to vector<16x1xf32>
    %74 = arith.divf %72, %73 : vector<16x1xf32>
    %75 = vector.broadcast %74 : vector<16x1xf32> to vector<16x32xf32>
    %76 = arith.subf %70, %75 : vector<16x32xf32>
    %77 = arith.mulf %76, %76 : vector<16x32xf32>
    %cst_45 = arith.constant dense<0.000000e+00> : vector<16xf32>
    %78 = vector.multi_reduction <add>, %77, %cst_45 [1] : vector<16x32xf32> to vector<16xf32>
    %79 = vector.shape_cast %78 : vector<16xf32> to vector<16x1xf32>
    %cst_46 = arith.constant 3.200000e+01 : f32
    %80 = vector.broadcast %cst_46 : f32 to vector<16x1xf32>
    %81 = arith.divf %79, %80 : vector<16x1xf32>
    %82 = vector.broadcast %74 : vector<16x1xf32> to vector<16x32xf32>
    %83 = arith.subf %70, %82 : vector<16x32xf32>
    %cst_47 = arith.constant 9.99999974E-6 : f32
    %84 = vector.broadcast %cst_47 : f32 to vector<16x1xf32>
    %85 = arith.addf %81, %84 : vector<16x1xf32>
    %86 = math.rsqrt %85 : vector<16x1xf32>
    %87 = vector.broadcast %86 : vector<16x1xf32> to vector<16x32xf32>
    %88 = arith.mulf %83, %87 : vector<16x32xf32>
    %89 = vector.broadcast %27 : vector<1x32xf32> to vector<16x32xf32>
    %90 = arith.mulf %88, %89 : vector<16x32xf32>
    %91 = vector.broadcast %29 : vector<1x32xf32> to vector<16x32xf32>
    %92 = arith.addf %90, %91 : vector<16x32xf32>
    %cst_48 = arith.constant dense<0.000000e+00> : vector<16x64xf32>
    %93 = tpu.matmul %92, %21, %cst_48 {dimension_numbers = #tpu.dot_dimension_numbers<[1], [0], [0], [1], [0, 0, 1, 1], [], []>} : vector<16x32xf32>, vector<32x64xf32>, vector<16x64xf32> -> vector<16x64xf32>
    %94 = vector.broadcast %37 : vector<1x64xf32> to vector<16x64xf32>
    %95 = arith.addf %93, %94 : vector<16x64xf32>
    %cst_49 = arith.constant 0.000000e+00 : f32
    %96 = vector.broadcast %cst_49 : f32 to vector<16x64xf32>
    %97 = arith.maximumf %95, %96 : vector<16x64xf32>
    %cst_50 = arith.constant dense<0.000000e+00> : vector<16x32xf32>
    %98 = tpu.matmul %97, %23, %cst_50 {dimension_numbers = #tpu.dot_dimension_numbers<[1], [0], [0], [1], [0, 0, 1, 1], [], []>} : vector<16x64xf32>, vector<64x32xf32>, vector<16x32xf32> -> vector<16x32xf32>
    %99 = vector.broadcast %35 : vector<1x32xf32> to vector<16x32xf32>
    %100 = arith.addf %98, %99 : vector<16x32xf32>
    %101 = arith.addf %100, %92 : vector<16x32xf32>
    %cst_51 = arith.constant dense<0.000000e+00> : vector<16xf32>
    %102 = vector.multi_reduction <add>, %101, %cst_51 [1] : vector<16x32xf32> to vector<16xf32>
    %103 = vector.shape_cast %102 : vector<16xf32> to vector<16x1xf32>
    %cst_52 = arith.constant 3.200000e+01 : f32
    %104 = vector.broadcast %cst_52 : f32 to vector<16x1xf32>
    %105 = arith.divf %103, %104 : vector<16x1xf32>
    %106 = vector.broadcast %105 : vector<16x1xf32> to vector<16x32xf32>
    %107 = arith.subf %101, %106 : vector<16x32xf32>
    %108 = arith.mulf %107, %107 : vector<16x32xf32>
    %cst_53 = arith.constant dense<0.000000e+00> : vector<16xf32>
    %109 = vector.multi_reduction <add>, %108, %cst_53 [1] : vector<16x32xf32> to vector<16xf32>
    %110 = vector.shape_cast %109 : vector<16xf32> to vector<16x1xf32>
    %cst_54 = arith.constant 3.200000e+01 : f32
    %111 = vector.broadcast %cst_54 : f32 to vector<16x1xf32>
    %112 = arith.divf %110, %111 : vector<16x1xf32>
    %113 = vector.broadcast %105 : vector<16x1xf32> to vector<16x32xf32>
    %114 = arith.subf %101, %113 : vector<16x32xf32>
    %cst_55 = arith.constant 9.99999974E-6 : f32
    %115 = vector.broadcast %cst_55 : f32 to vector<16x1xf32>
    %116 = arith.addf %112, %115 : vector<16x1xf32>
    %117 = math.rsqrt %116 : vector<16x1xf32>
    %118 = vector.broadcast %117 : vector<16x1xf32> to vector<16x32xf32>
    %119 = arith.mulf %114, %118 : vector<16x32xf32>
    %120 = vector.broadcast %31 : vector<1x32xf32> to vector<16x32xf32>
    %121 = arith.mulf %119, %120 : vector<16x32xf32>
    %122 = vector.broadcast %33 : vector<1x32xf32> to vector<16x32xf32>
    %123 = arith.addf %121, %122 : vector<16x32xf32>
    %c1_56 = arith.constant 1 : index
    %c0_57 = arith.constant 0 : index
    %c0_58 = arith.constant 0 : index
    %c0_59 = arith.constant 0 : index
    %124 = vector.load %arg3[%c1_56, %c0_57, %c0_58, %c0_59] : memref<2x4x32x24xf32, #tpu.memory_space<vmem>>, vector<1x4x32x24xf32>
    %125 = vector.shape_cast %124 : vector<1x4x32x24xf32> to vector<4x32x24xf32>
    %c1_60 = arith.constant 1 : index
    %c0_61 = arith.constant 0 : index
    %c0_62 = arith.constant 0 : index
    %c0_63 = arith.constant 0 : index
    %126 = vector.load %arg4[%c1_60, %c0_61, %c0_62, %c0_63] : memref<2x4x8x32xf32, #tpu.memory_space<vmem>>, vector<1x4x8x32xf32>
    %127 = vector.shape_cast %126 : vector<1x4x8x32xf32> to vector<4x8x32xf32>
    %c1_64 = arith.constant 1 : index
    %c0_65 = arith.constant 0 : index
    %c0_66 = arith.constant 0 : index
    %128 = vector.load %arg5[%c1_64, %c0_65, %c0_66] : memref<2x32x64xf32, #tpu.memory_space<vmem>>, vector<1x32x64xf32>
    %129 = vector.shape_cast %128 : vector<1x32x64xf32> to vector<32x64xf32>
    %c1_67 = arith.constant 1 : index
    %c0_68 = arith.constant 0 : index
    %c0_69 = arith.constant 0 : index
    %130 = vector.load %arg6[%c1_67, %c0_68, %c0_69] : memref<2x64x32xf32, #tpu.memory_space<vmem>>, vector<1x64x32xf32>
    %131 = vector.shape_cast %130 : vector<1x64x32xf32> to vector<64x32xf32>
    %c1_70 = arith.constant 1 : index
    %c0_71 = arith.constant 0 : index
    %c0_72 = arith.constant 0 : index
    %132 = vector.load %arg7[%c1_70, %c0_71, %c0_72] : memref<2x8x128xf32, #tpu.memory_space<vmem>>, vector<1x1x32xf32>
    %133 = vector.shape_cast %132 : vector<1x1x32xf32> to vector<1x32xf32>
    %c1_73 = arith.constant 1 : index
    %c1_74 = arith.constant 1 : index
    %c0_75 = arith.constant 0 : index
    %134 = vector.load %arg7[%c1_73, %c1_74, %c0_75] : memref<2x8x128xf32, #tpu.memory_space<vmem>>, vector<1x1x32xf32>
    %135 = vector.shape_cast %134 : vector<1x1x32xf32> to vector<1x32xf32>
    %c1_76 = arith.constant 1 : index
    %c2_77 = arith.constant 2 : index
    %c0_78 = arith.constant 0 : index
    %136 = vector.load %arg7[%c1_76, %c2_77, %c0_78] : memref<2x8x128xf32, #tpu.memory_space<vmem>>, vector<1x1x32xf32>
    %137 = vector.shape_cast %136 : vector<1x1x32xf32> to vector<1x32xf32>
    %c1_79 = arith.constant 1 : index
    %c3_80 = arith.constant 3 : index
    %c0_81 = arith.constant 0 : index
    %138 = vector.load %arg7[%c1_79, %c3_80, %c0_81] : memref<2x8x128xf32, #tpu.memory_space<vmem>>, vector<1x1x32xf32>
    %139 = vector.shape_cast %138 : vector<1x1x32xf32> to vector<1x32xf32>
    %c1_82 = arith.constant 1 : index
    %c4_83 = arith.constant 4 : index
    %c0_84 = arith.constant 0 : index
    %140 = vector.load %arg7[%c1_82, %c4_83, %c0_84] : memref<2x8x128xf32, #tpu.memory_space<vmem>>, vector<1x1x32xf32>
    %141 = vector.shape_cast %140 : vector<1x1x32xf32> to vector<1x32xf32>
    %c1_85 = arith.constant 1 : index
    %c5_86 = arith.constant 5 : index
    %c0_87 = arith.constant 0 : index
    %142 = vector.load %arg7[%c1_85, %c5_86, %c0_87] : memref<2x8x128xf32, #tpu.memory_space<vmem>>, vector<1x1x32xf32>
    %143 = vector.shape_cast %142 : vector<1x1x32xf32> to vector<1x32xf32>
    %c1_88 = arith.constant 1 : index
    %c6_89 = arith.constant 6 : index
    %c0_90 = arith.constant 0 : index
    %144 = vector.load %arg7[%c1_88, %c6_89, %c0_90] : memref<2x8x128xf32, #tpu.memory_space<vmem>>, vector<1x1x64xf32>
    %145 = vector.shape_cast %144 : vector<1x1x64xf32> to vector<1x64xf32>
    %146 = vector.shape_cast %123 : vector<16x32xf32> to vector<1x16x32xf32>
    %147 = vector.shape_cast %146 : vector<1x16x32xf32> to vector<1x16x32xf32>
    %148 = vector.broadcast %147 : vector<1x16x32xf32> to vector<4x16x32xf32>
    "tpu.trace_start"() <{level = 10 : i32, message = "hne,hec->hnc"}> : () -> ()
    %cst_91 = arith.constant dense<0.000000e+00> : vector<4x16x24xf32>
    %149 = tpu.matmul %148, %125, %cst_91 {dimension_numbers = #tpu.dot_dimension_numbers<[2], [1], [1], [2], [0, 0, 0, 1, 1, 2], [0], [0]>} : vector<4x16x32xf32>, vector<4x32x24xf32>, vector<4x16x24xf32> -> vector<4x16x24xf32>
    "tpu.trace_stop"() : () -> ()
    %150 = vector.extract_strided_slice %149 {offsets = [0, 0, 0], sizes = [4, 16, 8], strides = [1, 1, 1]} : vector<4x16x24xf32> to vector<4x16x8xf32>
    %151 = vector.shape_cast %150 : vector<4x16x8xf32> to vector<8x8x8xf32>
    %152 = vector.extract_strided_slice %149 {offsets = [0, 0, 8], sizes = [4, 16, 8], strides = [1, 1, 1]} : vector<4x16x24xf32> to vector<4x16x8xf32>
    %153 = vector.shape_cast %152 : vector<4x16x8xf32> to vector<8x8x8xf32>
    %154 = vector.extract_strided_slice %149 {offsets = [0, 0, 16], sizes = [4, 16, 8], strides = [1, 1, 1]} : vector<4x16x24xf32> to vector<4x16x8xf32>
    %155 = vector.shape_cast %154 : vector<4x16x8xf32> to vector<8x8x8xf32>
    "tpu.trace_start"() <{level = 10 : i32, message = "ztd,zsd->zts"}> : () -> ()
    %cst_92 = arith.constant dense<0.000000e+00> : vector<8x8x8xf32>
    %156 = tpu.matmul %151, %153, %cst_92 {dimension_numbers = #tpu.dot_dimension_numbers<[2], [2], [1], [1], [0, 0, 0, 1, 1, 1], [0], [0]>} : vector<8x8x8xf32>, vector<8x8x8xf32>, vector<8x8x8xf32> -> vector<8x8x8xf32>
    %cst_93 = arith.constant 0.000000e+00 : f32
    "tpu.trace_stop"() : () -> ()
    %157 = vector.broadcast %cst_93 : f32 to vector<8x8x8xf32>
    %158 = arith.cmpf oeq, %15, %157 : vector<8x8x8xf32>
    %159 = arith.mulf %156, %11 : vector<8x8x8xf32>
    %cst_94 = arith.constant -1.000000e+20 : f32
    %160 = vector.broadcast %cst_94 : f32 to vector<8x8x8xf32>
    %161 = arith.select %158, %160, %159 : vector<8x8x8xi1>, vector<8x8x8xf32>
    %cst_95 = arith.constant dense<0xFF800000> : vector<8x8xf32>
    %162 = vector.multi_reduction <maximumf>, %161, %cst_95 [2] : vector<8x8x8xf32> to vector<8x8xf32>
    %163 = vector.shape_cast %162 : vector<8x8xf32> to vector<8x8x1xf32>
    %164 = vector.broadcast %163 : vector<8x8x1xf32> to vector<8x8x8xf32>
    %165 = arith.subf %161, %164 : vector<8x8x8xf32>
    %166 = math.exp %165 : vector<8x8x8xf32>
    %cst_96 = arith.constant dense<0.000000e+00> : vector<8x8xf32>
    %167 = vector.multi_reduction <add>, %166, %cst_96 [2] : vector<8x8x8xf32> to vector<8x8xf32>
    %168 = vector.shape_cast %167 : vector<8x8xf32> to vector<8x8x1xf32>
    %169 = tpu.reciprocal %168 {approx = true} : vector<8x8x1xf32> -> vector<8x8x1xf32>
    %170 = vector.broadcast %169 : vector<8x8x1xf32> to vector<8x8x8xf32>
    %171 = arith.mulf %166, %170 : vector<8x8x8xf32>
    "tpu.trace_start"() <{level = 10 : i32, message = "zts,zsd->ztd"}> : () -> ()
    %cst_97 = arith.constant dense<0.000000e+00> : vector<8x8x8xf32>
    %172 = tpu.matmul %171, %155, %cst_97 {dimension_numbers = #tpu.dot_dimension_numbers<[2], [1], [1], [2], [0, 0, 0, 1, 1, 2], [0], [0]>} : vector<8x8x8xf32>, vector<8x8x8xf32>, vector<8x8x8xf32> -> vector<8x8x8xf32>
    "tpu.trace_stop"() : () -> ()
    %173 = vector.shape_cast %172 : vector<8x8x8xf32> to vector<4x16x8xf32>
    "tpu.trace_start"() <{level = 10 : i32, message = "hnd,hde->hne"}> : () -> ()
    %cst_98 = arith.constant dense<0.000000e+00> : vector<4x16x32xf32>
    %174 = tpu.matmul %173, %127, %cst_98 {dimension_numbers = #tpu.dot_dimension_numbers<[2], [1], [1], [2], [0, 0, 0, 1, 1, 2], [0], [0]>} : vector<4x16x8xf32>, vector<4x8x32xf32>, vector<4x16x32xf32> -> vector<4x16x32xf32>
    "tpu.trace_stop"() : () -> ()
    %cst_99 = arith.constant dense<0.000000e+00> : vector<16x32xf32>
    %175 = vector.multi_reduction <add>, %174, %cst_99 [0] : vector<4x16x32xf32> to vector<16x32xf32>
    %176 = vector.broadcast %133 : vector<1x32xf32> to vector<16x32xf32>
    %177 = arith.addf %175, %176 : vector<16x32xf32>
    %178 = arith.addf %177, %123 : vector<16x32xf32>
    %cst_100 = arith.constant dense<0.000000e+00> : vector<16xf32>
    %179 = vector.multi_reduction <add>, %178, %cst_100 [1] : vector<16x32xf32> to vector<16xf32>
    %180 = vector.shape_cast %179 : vector<16xf32> to vector<16x1xf32>
    %cst_101 = arith.constant 3.200000e+01 : f32
    %181 = vector.broadcast %cst_101 : f32 to vector<16x1xf32>
    %182 = arith.divf %180, %181 : vector<16x1xf32>
    %183 = vector.broadcast %182 : vector<16x1xf32> to vector<16x32xf32>
    %184 = arith.subf %178, %183 : vector<16x32xf32>
    %185 = arith.mulf %184, %184 : vector<16x32xf32>
    %cst_102 = arith.constant dense<0.000000e+00> : vector<16xf32>
    %186 = vector.multi_reduction <add>, %185, %cst_102 [1] : vector<16x32xf32> to vector<16xf32>
    %187 = vector.shape_cast %186 : vector<16xf32> to vector<16x1xf32>
    %cst_103 = arith.constant 3.200000e+01 : f32
    %188 = vector.broadcast %cst_103 : f32 to vector<16x1xf32>
    %189 = arith.divf %187, %188 : vector<16x1xf32>
    %190 = vector.broadcast %182 : vector<16x1xf32> to vector<16x32xf32>
    %191 = arith.subf %178, %190 : vector<16x32xf32>
    %cst_104 = arith.constant 9.99999974E-6 : f32
    %192 = vector.broadcast %cst_104 : f32 to vector<16x1xf32>
    %193 = arith.addf %189, %192 : vector<16x1xf32>
    %194 = math.rsqrt %193 : vector<16x1xf32>
    %195 = vector.broadcast %194 : vector<16x1xf32> to vector<16x32xf32>
    %196 = arith.mulf %191, %195 : vector<16x32xf32>
    %197 = vector.broadcast %135 : vector<1x32xf32> to vector<16x32xf32>
    %198 = arith.mulf %196, %197 : vector<16x32xf32>
    %199 = vector.broadcast %137 : vector<1x32xf32> to vector<16x32xf32>
    %200 = arith.addf %198, %199 : vector<16x32xf32>
    %cst_105 = arith.constant dense<0.000000e+00> : vector<16x64xf32>
    %201 = tpu.matmul %200, %129, %cst_105 {dimension_numbers = #tpu.dot_dimension_numbers<[1], [0], [0], [1], [0, 0, 1, 1], [], []>} : vector<16x32xf32>, vector<32x64xf32>, vector<16x64xf32> -> vector<16x64xf32>
    %202 = vector.broadcast %145 : vector<1x64xf32> to vector<16x64xf32>
    %203 = arith.addf %201, %202 : vector<16x64xf32>
    %cst_106 = arith.constant 0.000000e+00 : f32
    %204 = vector.broadcast %cst_106 : f32 to vector<16x64xf32>
    %205 = arith.maximumf %203, %204 : vector<16x64xf32>
    %cst_107 = arith.constant dense<0.000000e+00> : vector<16x32xf32>
    %206 = tpu.matmul %205, %131, %cst_107 {dimension_numbers = #tpu.dot_dimension_numbers<[1], [0], [0], [1], [0, 0, 1, 1], [], []>} : vector<16x64xf32>, vector<64x32xf32>, vector<16x32xf32> -> vector<16x32xf32>
    %207 = vector.broadcast %143 : vector<1x32xf32> to vector<16x32xf32>
    %208 = arith.addf %206, %207 : vector<16x32xf32>
    %209 = arith.addf %208, %200 : vector<16x32xf32>
    %cst_108 = arith.constant dense<0.000000e+00> : vector<16xf32>
    %210 = vector.multi_reduction <add>, %209, %cst_108 [1] : vector<16x32xf32> to vector<16xf32>
    %211 = vector.shape_cast %210 : vector<16xf32> to vector<16x1xf32>
    %cst_109 = arith.constant 3.200000e+01 : f32
    %212 = vector.broadcast %cst_109 : f32 to vector<16x1xf32>
    %213 = arith.divf %211, %212 : vector<16x1xf32>
    %214 = vector.broadcast %213 : vector<16x1xf32> to vector<16x32xf32>
    %215 = arith.subf %209, %214 : vector<16x32xf32>
    %216 = arith.mulf %215, %215 : vector<16x32xf32>
    %cst_110 = arith.constant dense<0.000000e+00> : vector<16xf32>
    %217 = vector.multi_reduction <add>, %216, %cst_110 [1] : vector<16x32xf32> to vector<16xf32>
    %218 = vector.shape_cast %217 : vector<16xf32> to vector<16x1xf32>
    %cst_111 = arith.constant 3.200000e+01 : f32
    %219 = vector.broadcast %cst_111 : f32 to vector<16x1xf32>
    %220 = arith.divf %218, %219 : vector<16x1xf32>
    %221 = vector.broadcast %213 : vector<16x1xf32> to vector<16x32xf32>
    %222 = arith.subf %209, %221 : vector<16x32xf32>
    %cst_112 = arith.constant 9.99999974E-6 : f32
    %223 = vector.broadcast %cst_112 : f32 to vector<16x1xf32>
    %224 = arith.addf %220, %223 : vector<16x1xf32>
    %225 = math.rsqrt %224 : vector<16x1xf32>
    %226 = vector.broadcast %225 : vector<16x1xf32> to vector<16x32xf32>
    %227 = arith.mulf %222, %226 : vector<16x32xf32>
    %228 = vector.broadcast %139 : vector<1x32xf32> to vector<16x32xf32>
    %229 = arith.mulf %227, %228 : vector<16x32xf32>
    %230 = vector.broadcast %141 : vector<1x32xf32> to vector<16x32xf32>
    %231 = arith.addf %229, %230 : vector<16x32xf32>
    %c0_113 = arith.constant 0 : index
    %c0_114 = arith.constant 0 : index
    %232 = vector.load %arg8[%c0_113, %c0_114] : memref<16x32xf32, #tpu.memory_space<vmem>>, vector<16x32xf32>
    tpu.vector_store %arg8[%c0_113, %c0_114], %231 {strides = array<i32>} : memref<16x32xf32, #tpu.memory_space<vmem>>, vector<16x32xf32>,
    return
  }
}

</mosaic_0001>

<llo_original>
// kernel: encoder_forward.1
$region0: #{encoder_forward.1}
  #allocation0 [shape = 'u32[]', space=smem, size = 0x4, offset = 0x4, fixed_abs, tag = 'smem constant byte address 0x4 - core index']
  #allocation1 [shape = 'u32[72,128]{1,0:T(1,128)}', space=vmem, size = 0x9000, scoped, tag = 'internal scratch']
  %s0 = inlined_call_operand.vmem [shape: f32[16,32], index: 0, kind: input, shape index: {}]
  %s1 = inlined_call_operand.vmem [shape: f32[2,8,8], index: 1, kind: input, shape index: {}]
  %s2 = inlined_call_operand.vmem [shape: f32[2,8], index: 2, kind: input, shape index: {}]
  %s3 = inlined_call_operand.vmem [shape: f32[2,4,32,24], index: 3, kind: input, shape index: {}]
  %s4 = inlined_call_operand.vmem [shape: f32[2,4,8,32], index: 4, kind: input, shape index: {}]
  %s5 = inlined_call_operand.vmem [shape: f32[2,32,64], index: 5, kind: input, shape index: {}]
  %s6 = inlined_call_operand.vmem [shape: f32[2,64,32], index: 6, kind: input, shape index: {}]
  %s7 = inlined_call_operand.vmem [shape: f32[2,8,128], index: 7, kind: input, shape index: {}]
  %s8 = inlined_call_operand.hbm [shape: f32[16,32], index: 8, kind: output, shape index: {}]
  %s9 = sld [smem:[#allocation0]]
  $region42: #{encoder_forward.1} parent=0
    _
  %s11 = ssub.s32 1, %s9
  %s12 = scalar_select 0, %s11, %s9
  $region1: #{encoder_forward.1} parent=0
    #allocation2 [shape = 'u8[8192]{0}', space=vmem, size = 0x2000, scoped, tag = 'output window, operand 0, single buffered']
    #allocation3 [shape = 's32[1]{0}', space=sflag, size = 0x4, scoped, tag = 'scoped memory for encoder_forward.1']
    %13 = vsyncpa [#allocation3], 0
    // Predicated region
    $region2: #{encoder_forward.1} parent=1 // pred_check
      _
    $region3: #{encoder_forward.1} parent=1 // pred_check_branch
      %15 = sbr.rel (0) target = $region5
    $region4: #{encoder_forward.1} parent=1 // pred_region
      _
    $region5: #{encoder_forward.1} parent=1 // pred_fallthru
      _
    // Predicated region
    $region6: #{encoder_forward.1} parent=1 // pred_check
      _
    $region7: #{encoder_forward.1} parent=1 // pred_check_branch
      %17 = sbr.rel (0) target = $region9
    $region8: #{encoder_forward.1} parent=1 // pred_region
      _
    $region9: #{encoder_forward.1} parent=1 // pred_fallthru
      _
    // Predicated region
    $region10: #{encoder_forward.1} parent=1 // pred_check
      _
    $region11: #{encoder_forward.1} parent=1 // pred_check_branch
      %19 = sbr.rel (0) target = $region13
    $region12: #{encoder_forward.1} parent=1 // pred_region
      _
    $region13: #{encoder_forward.1} parent=1 // pred_fallthru
      _
    // Predicated region
    $region14: #{encoder_forward.1} parent=1 // pred_check
      _
    $region15: #{encoder_forward.1} parent=1 // pred_check_branch
      %21 = sbr.rel (0) target = $region17
    $region16: #{encoder_forward.1} parent=1 // pred_region
      _
    $region17: #{encoder_forward.1} parent=1 // pred_fallthru
      _
    // Predicated region
    $region18: #{encoder_forward.1} parent=1 // pred_check
      _
    $region19: #{encoder_forward.1} parent=1 // pred_check_branch
      %23 = sbr.rel (0) target = $region21
    $region20: #{encoder_forward.1} parent=1 // pred_region
      _
    $region21: #{encoder_forward.1} parent=1 // pred_fallthru
      _
    // Predicated region
    $region22: #{encoder_forward.1} parent=1 // pred_check
      _
    $region23: #{encoder_forward.1} parent=1 // pred_check_branch
      %25 = sbr.rel (0) target = $region25
    $region24: #{encoder_forward.1} parent=1 // pred_region
      _
    $region25: #{encoder_forward.1} parent=1 // pred_fallthru
      _
    // Predicated region
    $region26: #{encoder_forward.1} parent=1 // pred_check
      _
    $region27: #{encoder_forward.1} parent=1 // pred_check_branch
      %27 = sbr.rel (0) target = $region29
    $region28: #{encoder_forward.1} parent=1 // pred_region
      _
    $region29: #{encoder_forward.1} parent=1 // pred_fallthru
      _
    // Predicated region
    $region30: #{encoder_forward.1} parent=1 // pred_check
      _
    $region31: #{encoder_forward.1} parent=1 // pred_check_branch
      %29 = sbr.rel (0) target = $region33
    $region32: #{encoder_forward.1} parent=1 // pred_region
      _
    $region33: #{encoder_forward.1} parent=1 // pred_fallthru
      _
    %v30 = vld [vmem:[%s0] sm:$0xff]
    %v31 = vld [vmem:[%s0 + $0x8] sm:$0xff]
    %v32 = vld [vmem:[%s2] sm:$0x3]
    %v33 = vperm.slane %v32, 0
    %v34 = vlaneseq
    %v35 = vshrl.u32 %v34, 7
    %37 = vset.pattern.permute.xlu0 %v35
    %38 = vperm.xlu0 %37, %v33
    %v39 = vpop.permute.xlu0 %38
    %v40 = vperm.slane %v32, 1
    %v41 = vlaneseq
    %v42 = vshrl.u32 %v41, 7
    %44 = vset.pattern.permute.xlu0 %v42
    %45 = vperm.xlu0 %44, %v40
    %v46 = vpop.permute.xlu0 %45
    %v48 = vrot.slane %v32, 1
    %v49 = vperm.slane %v32, 0
    %v50 = vperm.slane %v48, 0
    %v53 = vmul.f32 %v39, %v49
    %v54 = vmul.f32 %v46, %v50
    %v55 = vld [vmem:[%s1] sm:$0xff]
    %v56 = vld [vmem:[%s1 + $0x8] sm:$0xff]
    %v57 = vld [vmem:[%s3] sm:$0xff]
    %v58 = vld [vmem:[%s3 + $0x8] sm:$0xff]
    %v59 = vld [vmem:[%s3 + $0x10] sm:$0xff]
    %v60 = vld [vmem:[%s3 + $0x18] sm:$0xff]
    %v61 = vld [vmem:[%s3 + $0x20] sm:$0xff]
    %v62 = vld [vmem:[%s3 + $0x28] sm:$0xff]
    %v63 = vld [vmem:[%s3 + $0x30] sm:$0xff]
    %v64 = vld [vmem:[%s3 + $0x38] sm:$0xff]
    %v65 = vld [vmem:[%s3 + $0x40] sm:$0xff]
    %v66 = vld [vmem:[%s3 + $0x48] sm:$0xff]
    %v67 = vld [vmem:[%s3 + $0x50] sm:$0xff]
    %v68 = vld [vmem:[%s3 + $0x58] sm:$0xff]
    %v69 = vld [vmem:[%s3 + $0x60] sm:$0xff]
    %v70 = vld [vmem:[%s3 + $0x68] sm:$0xff]
    %v71 = vld [vmem:[%s3 + $0x70] sm:$0xff]
    %v72 = vld [vmem:[%s3 + $0x78] sm:$0xff]
    %v73 = vld [vmem:[%s4] sm:$0xff]
    %v74 = vld [vmem:[%s4 + $0x8] sm:$0xff]
    %v75 = vld [vmem:[%s4 + $0x10] sm:$0xff]
    %v76 = vld [vmem:[%s4 + $0x18] sm:$0xff]
    %v77 = vld [vmem:[%s5] sm:$0xff]
    %v78 = vld [vmem:[%s5 + $0x8] sm:$0xff]
    %v79 = vld [vmem:[%s5 + $0x10] sm:$0xff]
    %v80 = vld [vmem:[%s5 + $0x18] sm:$0xff]
    %v81 = vld [vmem:[%s6] sm:$0xff]
    %v82 = vld [vmem:[%s6 + $0x8] sm:$0xff]
    %v83 = vld [vmem:[%s6 + $0x10] sm:$0xff]
    %v84 = vld [vmem:[%s6 + $0x18] sm:$0xff]
    %v85 = vld [vmem:[%s6 + $0x20] sm:$0xff]
    %v86 = vld [vmem:[%s6 + $0x28] sm:$0xff]
    %v87 = vld [vmem:[%s6 + $0x30] sm:$0xff]
    %v88 = vld [vmem:[%s6 + $0x38] sm:$0xff]
    %v89 = vld [vmem:[%s7] sm:$0x1]
    %v90 = vld [vmem:[%s7 + $0x1] sm:$0x1]
    %v91 = vld [vmem:[%s7 + $0x2] sm:$0x1]
    %v92 = vld [vmem:[%s7 + $0x3] sm:$0x1]
    %v93 = vld [vmem:[%s7 + $0x4] sm:$0x1]
    %v94 = vld [vmem:[%s7 + $0x5] sm:$0x1]
    %v95 = vld [vmem:[%s7 + $0x6] sm:$0x1]
    %vm96 = vcmask 261120
    %v98 = vsel %vm96, %v30, 0
    %v101 = vsel %vm96, %v31, 0
    %103 = vmatpush.msra.mxu0 0.0
    %104 = vmatpush.msra.mxu0 0.0
    %105 = vmatpush.msra.mxu0 0.0
    %106 = vmatpush.msra.mxu0 0.0
    %107 = vmatpush.msra.mxu0 0.0
    %108 = vmatpush.msra.mxu0 0.0
    %109 = vmatpush.msra.mxu0 0.0
    %110 = vmatpush.msra.mxu0 0.0
    %111 = vmatpush.msra.mxu0 0.0
    %112 = vmatpush.msra.mxu0 0.0
    %113 = vmatpush.msra.mxu0 0.0
    %114 = vmatpush.msra.mxu0 0.0
    %115 = vmatpush.msra.mxu0 %v60
    %116 = vmatpush.msra.mxu0 %v59
    %117 = vmatpush.msra.mxu0 %v58
    %118 = vmatpush.msra.mxu0 %v57
    %119 = vmatmul.f32.gmra.mxu0 %v98
    %v120 = vpop.f32.mrf.mxu0
    %v121 = vadd.f32 0.0, %v120
    %122 = vmatmul.f32.gmra.mxu0 %v101
    %v123 = vpop.f32.mrf.mxu0
    %v124 = vadd.f32 0.0, %v123
    %125 = vdwg.mxu0
    %126 = vmatpush.msra.mxu0 0.0
    %127 = vmatpush.msra.mxu0 0.0
    %128 = vmatpush.msra.mxu0 0.0
    %129 = vmatpush.msra.mxu0 0.0
    %130 = vmatpush.msra.mxu0 0.0
    %131 = vmatpush.msra.mxu0 0.0
    %132 = vmatpush.msra.mxu0 0.0
    %133 = vmatpush.msra.mxu0 0.0
    %134 = vmatpush.msra.mxu0 0.0
    %135 = vmatpush.msra.mxu0 0.0
    %136 = vmatpush.msra.mxu0 0.0
    %137 = vmatpush.msra.mxu0 0.0
    %138 = vmatpush.msra.mxu0 %v64
    %139 = vmatpush.msra.mxu0 %v63
    %140 = vmatpush.msra.mxu0 %v62
    %141 = vmatpush.msra.mxu0 %v61
    %142 = vmatmul.f32.gmra.mxu0 %v98
    %v143 = vpop.f32.mrf.mxu0
    %v144 = vadd.f32 0.0, %v143
    %145 = vmatmul.f32.gmra.mxu0 %v101
    %v146 = vpop.f32.mrf.mxu0
    %v147 = vadd.f32 0.0, %v146
    %148 = vdwg.mxu0
    %149 = vmatpush.msra.mxu0 0.0
    %150 = vmatpush.msra.mxu0 0.0
    %151 = vmatpush.msra.mxu0 0.0
    %152 = vmatpush.msra.mxu0 0.0
    %153 = vmatpush.msra.mxu0 0.0
    %154 = vmatpush.msra.mxu0 0.0
    %155 = vmatpush.msra.mxu0 0.0
    %156 = vmatpush.msra.mxu0 0.0
    %157 = vmatpush.msra.mxu0 0.0
    %158 = vmatpush.msra.mxu0 0.0
    %159 = vmatpush.msra.mxu0 0.0
    %160 = vmatpush.msra.mxu0 0.0
    %161 = vmatpush.msra.mxu0 %v68
    %162 = vmatpush.msra.mxu0 %v67
    %163 = vmatpush.msra.mxu0 %v66
    %164 = vmatpush.msra.mxu0 %v65
    %165 = vmatmul.f32.gmra.mxu0 %v98
    %v166 = vpop.f32.mrf.mxu0
    %v167 = vadd.f32 0.0, %v166
    %168 = vmatmul.f32.gmra.mxu0 %v101
    %v169 = vpop.f32.mrf.mxu0
    %v170 = vadd.f32 0.0, %v169
    %171 = vdwg.mxu0
    %172 = vmatpush.msra.mxu0 0.0
    %173 = vmatpush.msra.mxu0 0.0
    %174 = vmatpush.msra.mxu0 0.0
    %175 = vmatpush.msra.mxu0 0.0
    %176 = vmatpush.msra.mxu0 0.0
    %177 = vmatpush.msra.mxu0 0.0
    %178 = vmatpush.msra.mxu0 0.0
    %179 = vmatpush.msra.mxu0 0.0
    %180 = vmatpush.msra.mxu0 0.0
    %181 = vmatpush.msra.mxu0 0.0
    %182 = vmatpush.msra.mxu0 0.0
    %183 = vmatpush.msra.mxu0 0.0
    %184 = vmatpush.msra.mxu0 %v72
    %185 = vmatpush.msra.mxu0 %v71
    %186 = vmatpush.msra.mxu0 %v70
    %187 = vmatpush.msra.mxu0 %v69
    %188 = vmatmul.f32.gmra.mxu0 %v98
    %v189 = vpop.f32.mrf.mxu0
    %v190 = vadd.f32 0.0, %v189
    %191 = vmatmul.f32.gmra.mxu0 %v101
    %v192 = vpop.f32.mrf.mxu0
    %v193 = vadd.f32 0.0, %v192
    %194 = vdwg.mxu0
    %196 = vrot.lane.b32.xlu0 %v121, 120
    %v197 = vpop.permute.xlu0 %196
    %vm198 = vcmask 64512
    %v199 = vsel %vm198, %v121, 0
    %v201 = vsel %vm198, %v197, 0
    %203 = vmatpush.xpose.msra.mxu0 0.0
    %204 = vmatpush.xpose.msra.mxu0 0.0
    %205 = vmatpush.xpose.msra.mxu0 0.0
    %206 = vmatpush.xpose.msra.mxu0 0.0
    %207 = vmatpush.xpose.msra.mxu0 0.0
    %208 = vmatpush.xpose.msra.mxu0 0.0
    %209 = vmatpush.xpose.msra.mxu0 0.0
    %210 = vmatpush.xpose.msra.mxu0 0.0
    %211 = vmatpush.xpose.msra.mxu0 0.0
    %212 = vmatpush.xpose.msra.mxu0 0.0
    %213 = vmatpush.xpose.msra.mxu0 0.0
    %214 = vmatpush.xpose.msra.mxu0 0.0
    %215 = vmatpush.xpose.msra.mxu0 0.0
    %216 = vmatpush.xpose.msra.mxu0 0.0
    %217 = vmatpush.xpose.msra.mxu0 0.0
    %218 = vmatpush.xpose.msra.mxu0 %v201
    %219 = vmatmul.f32.gmra.mxu0 %v199
    %v220 = vpop.f32.mrf.mxu0
    %v221 = vadd.f32 0.0, %v220
    %222 = vdwg.mxu0
    %224 = vrot.lane.b32.xlu0 %v124, 120
    %v225 = vpop.permute.xlu0 %224
    %v226 = vsel %vm198, %v124, 0
    %v228 = vsel %vm198, %v225, 0
    %230 = vmatpush.xpose.msra.mxu0 0.0
    %231 = vmatpush.xpose.msra.mxu0 0.0
    %232 = vmatpush.xpose.msra.mxu0 0.0
    %233 = vmatpush.xpose.msra.mxu0 0.0
    %234 = vmatpush.xpose.msra.mxu0 0.0
    %235 = vmatpush.xpose.msra.mxu0 0.0
    %236 = vmatpush.xpose.msra.mxu0 0.0
    %237 = vmatpush.xpose.msra.mxu0 0.0
    %238 = vmatpush.xpose.msra.mxu0 0.0
    %239 = vmatpush.xpose.msra.mxu0 0.0
    %240 = vmatpush.xpose.msra.mxu0 0.0
    %241 = vmatpush.xpose.msra.mxu0 0.0
    %242 = vmatpush.xpose.msra.mxu0 0.0
    %243 = vmatpush.xpose.msra.mxu0 0.0
    %244 = vmatpush.xpose.msra.mxu0 0.0
    %245 = vmatpush.xpose.msra.mxu0 %v228
    %246 = vmatmul.f32.gmra.mxu0 %v226
    %v247 = vpop.f32.mrf.mxu0
    %v248 = vadd.f32 0.0, %v247
    %249 = vdwg.mxu0
    %251 = vrot.lane.b32.xlu0 %v144, 120
    %v252 = vpop.permute.xlu0 %251
    %v253 = vsel %vm198, %v144, 0
    %v255 = vsel %vm198, %v252, 0
    %257 = vmatpush.xpose.msra.mxu0 0.0
    %258 = vmatpush.xpose.msra.mxu0 0.0
    %259 = vmatpush.xpose.msra.mxu0 0.0
    %260 = vmatpush.xpose.msra.mxu0 0.0
    %261 = vmatpush.xpose.msra.mxu0 0.0
    %262 = vmatpush.xpose.msra.mxu0 0.0
    %263 = vmatpush.xpose.msra.mxu0 0.0
    %264 = vmatpush.xpose.msra.mxu0 0.0
    %265 = vmatpush.xpose.msra.mxu0 0.0
    %266 = vmatpush.xpose.msra.mxu0 0.0
    %267 = vmatpush.xpose.msra.mxu0 0.0
    %268 = vmatpush.xpose.msra.mxu0 0.0
    %269 = vmatpush.xpose.msra.mxu0 0.0
    %270 = vmatpush.xpose.msra.mxu0 0.0
    %271 = vmatpush.xpose.msra.mxu0 0.0
    %272 = vmatpush.xpose.msra.mxu0 %v255
    %273 = vmatmul.f32.gmra.mxu0 %v253
    %v274 = vpop.f32.mrf.mxu0
    %v275 = vadd.f32 0.0, %v274
    %276 = vdwg.mxu0
    %278 = vrot.lane.b32.xlu0 %v147, 120
    %v279 = vpop.permute.xlu0 %278
    %v280 = vsel %vm198, %v147, 0
    %v282 = vsel %vm198, %v279, 0
    %284 = vmatpush.xpose.msra.mxu0 0.0
    %285 = vmatpush.xpose.msra.mxu0 0.0
    %286 = vmatpush.xpose.msra.mxu0 0.0
    %287 = vmatpush.xpose.msra.mxu0 0.0
    %288 = vmatpush.xpose.msra.mxu0 0.0
    %289 = vmatpush.xpose.msra.mxu0 0.0
    %290 = vmatpush.xpose.msra.mxu0 0.0
    %291 = vmatpush.xpose.msra.mxu0 0.0
    %292 = vmatpush.xpose.msra.mxu0 0.0
    %293 = vmatpush.xpose.msra.mxu0 0.0
    %294 = vmatpush.xpose.msra.mxu0 0.0
    %295 = vmatpush.xpose.msra.mxu0 0.0
    %296 = vmatpush.xpose.msra.mxu0 0.0
    %297 = vmatpush.xpose.msra.mxu0 0.0
    %298 = vmatpush.xpose.msra.mxu0 0.0
    %299 = vmatpush.xpose.msra.mxu0 %v282
    %300 = vmatmul.f32.gmra.mxu0 %v280
    %v301 = vpop.f32.mrf.mxu0
    %v302 = vadd.f32 0.0, %v301
    %303 = vdwg.mxu0
    %305 = vrot.lane.b32.xlu0 %v167, 120
    %v306 = vpop.permute.xlu0 %305
    %v307 = vsel %vm198, %v167, 0
    %v309 = vsel %vm198, %v306, 0
    %311 = vmatpush.xpose.msra.mxu0 0.0
    %312 = vmatpush.xpose.msra.mxu0 0.0
    %313 = vmatpush.xpose.msra.mxu0 0.0
    %314 = vmatpush.xpose.msra.mxu0 0.0
    %315 = vmatpush.xpose.msra.mxu0 0.0
    %316 = vmatpush.xpose.msra.mxu0 0.0
    %317 = vmatpush.xpose.msra.mxu0 0.0
    %318 = vmatpush.xpose.msra.mxu0 0.0
    %319 = vmatpush.xpose.msra.mxu0 0.0
    %320 = vmatpush.xpose.msra.mxu0 0.0
    %321 = vmatpush.xpose.msra.mxu0 0.0
    %322 = vmatpush.xpose.msra.mxu0 0.0
    %323 = vmatpush.xpose.msra.mxu0 0.0
    %324 = vmatpush.xpose.msra.mxu0 0.0
    %325 = vmatpush.xpose.msra.mxu0 0.0
    %326 = vmatpush.xpose.msra.mxu0 %v309
    %327 = vmatmul.f32.gmra.mxu0 %v307
    %v328 = vpop.f32.mrf.mxu0
    %v329 = vadd.f32 0.0, %v328
    %330 = vdwg.mxu0
    %332 = vrot.lane.b32.xlu0 %v170, 120
    %v333 = vpop.permute.xlu0 %332
    %v334 = vsel %vm198, %v170, 0
    %v336 = vsel %vm198, %v333, 0
    %338 = vmatpush.xpose.msra.mxu0 0.0
    %339 = vmatpush.xpose.msra.mxu0 0.0
    %340 = vmatpush.xpose.msra.mxu0 0.0
    %341 = vmatpush.xpose.msra.mxu0 0.0
    %342 = vmatpush.xpose.msra.mxu0 0.0
    %343 = vmatpush.xpose.msra.mxu0 0.0
    %344 = vmatpush.xpose.msra.mxu0 0.0
    %345 = vmatpush.xpose.msra.mxu0 0.0
    %346 = vmatpush.xpose.msra.mxu0 0.0
    %347 = vmatpush.xpose.msra.mxu0 0.0
    %348 = vmatpush.xpose.msra.mxu0 0.0
    %349 = vmatpush.xpose.msra.mxu0 0.0
    %350 = vmatpush.xpose.msra.mxu0 0.0
    %351 = vmatpush.xpose.msra.mxu0 0.0
    %352 = vmatpush.xpose.msra.mxu0 0.0
    %353 = vmatpush.xpose.msra.mxu0 %v336
    %354 = vmatmul.f32.gmra.mxu0 %v334
    %v355 = vpop.f32.mrf.mxu0
    %v356 = vadd.f32 0.0, %v355
    %357 = vdwg.mxu0
    %359 = vrot.lane.b32.xlu0 %v190, 120
    %v360 = vpop.permute.xlu0 %359
    %v361 = vsel %vm198, %v190, 0
    %v363 = vsel %vm198, %v360, 0
    %365 = vmatpush.xpose.msra.mxu0 0.0
    %366 = vmatpush.xpose.msra.mxu0 0.0
    %367 = vmatpush.xpose.msra.mxu0 0.0
    %368 = vmatpush.xpose.msra.mxu0 0.0
    %369 = vmatpush.xpose.msra.mxu0 0.0
    %370 = vmatpush.xpose.msra.mxu0 0.0
    %371 = vmatpush.xpose.msra.mxu0 0.0
    %372 = vmatpush.xpose.msra.mxu0 0.0
    %373 = vmatpush.xpose.msra.mxu0 0.0
    %374 = vmatpush.xpose.msra.mxu0 0.0
    %375 = vmatpush.xpose.msra.mxu0 0.0
    %376 = vmatpush.xpose.msra.mxu0 0.0
    %377 = vmatpush.xpose.msra.mxu0 0.0
    %378 = vmatpush.xpose.msra.mxu0 0.0
    %379 = vmatpush.xpose.msra.mxu0 0.0
    %380 = vmatpush.xpose.msra.mxu0 %v363
    %381 = vmatmul.f32.gmra.mxu0 %v361
    %v382 = vpop.f32.mrf.mxu0
    %v383 = vadd.f32 0.0, %v382
    %384 = vdwg.mxu0
    %386 = vrot.lane.b32.xlu0 %v193, 120
    %v387 = vpop.permute.xlu0 %386
    %v388 = vsel %vm198, %v193, 0
    %v390 = vsel %vm198, %v387, 0
    %392 = vmatpush.xpose.msra.mxu0 0.0
    %393 = vmatpush.xpose.msra.mxu0 0.0
    %394 = vmatpush.xpose.msra.mxu0 0.0
    %395 = vmatpush.xpose.msra.mxu0 0.0
    %396 = vmatpush.xpose.msra.mxu0 0.0
    %397 = vmatpush.xpose.msra.mxu0 0.0
    %398 = vmatpush.xpose.msra.mxu0 0.0
    %399 = vmatpush.xpose.msra.mxu0 0.0
    %400 = vmatpush.xpose.msra.mxu0 0.0
    %401 = vmatpush.xpose.msra.mxu0 0.0
    %402 = vmatpush.xpose.msra.mxu0 0.0
    %403 = vmatpush.xpose.msra.mxu0 0.0
    %404 = vmatpush.xpose.msra.mxu0 0.0
    %405 = vmatpush.xpose.msra.mxu0 0.0
    %406 = vmatpush.xpose.msra.mxu0 0.0
    %407 = vmatpush.xpose.msra.mxu0 %v390
    %408 = vmatmul.f32.gmra.mxu0 %v388
    %v409 = vpop.f32.mrf.mxu0
    %v410 = vadd.f32 0.0, %v409
    %411 = vdwg.mxu0
    %vm412 = vcmp.eq.f32.partialorder %v53, 0.0
    %vm413 = vcmp.eq.f32.partialorder %v54, 0.0
    %v414 = vmul.f32 %v221, %v55
    %v415 = vmul.f32 %v248, %v56
    %v416 = vmul.f32 %v275, %v55
    %v417 = vmul.f32 %v302, %v56
    %v418 = vmul.f32 %v329, %v55
    %v419 = vmul.f32 %v356, %v56
    %v420 = vmul.f32 %v383, %v55
    %v421 = vmul.f32 %v410, %v56
    %v422 = vsel %vm412, -1e+20, %v414
    %v423 = vsel %vm413, -1e+20, %v415
    %v424 = vsel %vm412, -1e+20, %v416
    %v425 = vsel %vm413, -1e+20, %v417
    %v426 = vsel %vm412, -1e+20, %v418
    %v427 = vsel %vm413, -1e+20, %v419
    %v428 = vsel %vm412, -1e+20, %v420
    %v429 = vsel %vm413, -1e+20, %v421
    %v430 = vsel %vm198, %v422, -inf
    %431 = vmax.xlane.f32.xlu0 %v430
    %v432 = vpop.xlane.xlu0 %431
    %v433 = vsel %vm198, %v423, -inf
    %434 = vmax.xlane.f32.xlu0 %v433
    %v435 = vpop.xlane.xlu0 %434
    %v436 = vsel %vm198, %v424, -inf
    %437 = vmax.xlane.f32.xlu0 %v436
    %v438 = vpop.xlane.xlu0 %437
    %v439 = vsel %vm198, %v425, -inf
    %440 = vmax.xlane.f32.xlu0 %v439
    %v441 = vpop.xlane.xlu0 %440
    %v442 = vsel %vm198, %v426, -inf
    %443 = vmax.xlane.f32.xlu0 %v442
    %v444 = vpop.xlane.xlu0 %443
    %v445 = vsel %vm198, %v427, -inf
    %446 = vmax.xlane.f32.xlu0 %v445
    %v447 = vpop.xlane.xlu0 %446
    %v448 = vsel %vm198, %v428, -inf
    %449 = vmax.xlane.f32.xlu0 %v448
    %v450 = vpop.xlane.xlu0 %449
    %v451 = vsel %vm198, %v429, -inf
    %452 = vmax.xlane.f32.xlu0 %v451
    %v453 = vpop.xlane.xlu0 %452
    %v454 = vsub.f32 %v422, %v432
    %v455 = vsub.f32 %v423, %v435
    %v456 = vsub.f32 %v424, %v438
    %v457 = vsub.f32 %v425, %v441
    %v458 = vsub.f32 %v426, %v444
    %v459 = vsub.f32 %v427, %v447
    %v460 = vsub.f32 %v428, %v450
    %v461 = vsub.f32 %v429, %v453
    %v462 = vmul.f32 %v454, 1.442695
    %v463 = vpow.pop %v462
    %v464 = vmul.f32 %v455, 1.442695
    %v465 = vpow.pop %v464
    %v466 = vmul.f32 %v456, 1.442695
    %v467 = vpow.pop %v466
    %v468 = vmul.f32 %v457, 1.442695
    %v469 = vpow.pop %v468
    %v470 = vmul.f32 %v458, 1.442695
    %v471 = vpow.pop %v470
    %v472 = vmul.f32 %v459, 1.442695
    %v473 = vpow.pop %v472
    %v474 = vmul.f32 %v460, 1.442695
    %v475 = vpow.pop %v474
    %v476 = vmul.f32 %v461, 1.442695
    %v477 = vpow.pop %v476
    %v478 = vsel %vm198, %v463, 0.0
    %479 = vadd.xlane.f32.xlu0 %v478
    %v480 = vpop.xlane.xlu0 %479
    %v481 = vsel %vm198, %v465, 0.0
    %482 = vadd.xlane.f32.xlu0 %v481
    %v483 = vpop.xlane.xlu0 %482
    %v484 = vsel %vm198, %v467, 0.0
    %485 = vadd.xlane.f32.xlu0 %v484
    %v486 = vpop.xlane.xlu0 %485
    %v487 = vsel %vm198, %v469, 0.0
    %488 = vadd.xlane.f32.xlu0 %v487
    %v489 = vpop.xlane.xlu0 %488
    %v490 = vsel %vm198, %v471, 0.0
    %491 = vadd.xlane.f32.xlu0 %v490
    %v492 = vpop.xlane.xlu0 %491
    %v493 = vsel %vm198, %v473, 0.0
    %494 = vadd.xlane.f32.xlu0 %v493
    %v495 = vpop.xlane.xlu0 %494
    %v496 = vsel %vm198, %v475, 0.0
    %497 = vadd.xlane.f32.xlu0 %v496
    %v498 = vpop.xlane.xlu0 %497
    %v499 = vsel %vm198, %v477, 0.0
    %500 = vadd.xlane.f32.xlu0 %v499
    %v501 = vpop.xlane.xlu0 %500
    %v502 = vrcp.pop %v480
    %v503 = vrcp.pop %v483
    %v504 = vrcp.pop %v486
    %v505 = vrcp.pop %v489
    %v506 = vrcp.pop %v492
    %v507 = vrcp.pop %v495
    %v508 = vrcp.pop %v498
    %v509 = vrcp.pop %v501
    %v510 = vmul.f32 %v463, %v502
    %v511 = vmul.f32 %v465, %v503
    %v512 = vmul.f32 %v467, %v504
    %v513 = vmul.f32 %v469, %v505
    %v514 = vmul.f32 %v471, %v506
    %v515 = vmul.f32 %v473, %v507
    %v516 = vmul.f32 %v475, %v508
    %v517 = vmul.f32 %v477, %v509
    %518 = vrot.lane.b32.xlu0 %v121, 112
    %v519 = vpop.permute.xlu0 %518
    %v522 = vsel %vm198, %v510, 0
    %524 = vmatpush.msra.mxu0 0.0
    %525 = vmatpush.msra.mxu0 0.0
    %526 = vmatpush.msra.mxu0 0.0
    %527 = vmatpush.msra.mxu0 0.0
    %528 = vmatpush.msra.mxu0 0.0
    %529 = vmatpush.msra.mxu0 0.0
    %530 = vmatpush.msra.mxu0 0.0
    %531 = vmatpush.msra.mxu0 0.0
    %532 = vmatpush.msra.mxu0 0.0
    %533 = vmatpush.msra.mxu0 0.0
    %534 = vmatpush.msra.mxu0 0.0
    %535 = vmatpush.msra.mxu0 0.0
    %536 = vmatpush.msra.mxu0 0.0
    %537 = vmatpush.msra.mxu0 0.0
    %538 = vmatpush.msra.mxu0 0.0
    %539 = vmatpush.msra.mxu0 %v519
    %540 = vmatmul.f32.gmra.mxu0 %v522
    %v541 = vpop.f32.mrf.mxu0
    %v542 = vadd.f32 0.0, %v541
    %543 = vdwg.mxu0
    %544 = vrot.lane.b32.xlu0 %v124, 112
    %v545 = vpop.permute.xlu0 %544
    %v548 = vsel %vm198, %v511, 0
    %550 = vmatpush.msra.mxu0 0.0
    %551 = vmatpush.msra.mxu0 0.0
    %552 = vmatpush.msra.mxu0 0.0
    %553 = vmatpush.msra.mxu0 0.0
    %554 = vmatpush.msra.mxu0 0.0
    %555 = vmatpush.msra.mxu0 0.0
    %556 = vmatpush.msra.mxu0 0.0
    %557 = vmatpush.msra.mxu0 0.0
    %558 = vmatpush.msra.mxu0 0.0
    %559 = vmatpush.msra.mxu0 0.0
    %560 = vmatpush.msra.mxu0 0.0
    %561 = vmatpush.msra.mxu0 0.0
    %562 = vmatpush.msra.mxu0 0.0
    %563 = vmatpush.msra.mxu0 0.0
    %564 = vmatpush.msra.mxu0 0.0
    %565 = vmatpush.msra.mxu0 %v545
    %566 = vmatmul.f32.gmra.mxu0 %v548
    %v567 = vpop.f32.mrf.mxu0
    %v568 = vadd.f32 0.0, %v567
    %569 = vdwg.mxu0
    %570 = vrot.lane.b32.xlu0 %v144, 112
    %v571 = vpop.permute.xlu0 %570
    %v574 = vsel %vm198, %v512, 0
    %576 = vmatpush.msra.mxu0 0.0
    %577 = vmatpush.msra.mxu0 0.0
    %578 = vmatpush.msra.mxu0 0.0
    %579 = vmatpush.msra.mxu0 0.0
    %580 = vmatpush.msra.mxu0 0.0
    %581 = vmatpush.msra.mxu0 0.0
    %582 = vmatpush.msra.mxu0 0.0
    %583 = vmatpush.msra.mxu0 0.0
    %584 = vmatpush.msra.mxu0 0.0
    %585 = vmatpush.msra.mxu0 0.0
    %586 = vmatpush.msra.mxu0 0.0
    %587 = vmatpush.msra.mxu0 0.0
    %588 = vmatpush.msra.mxu0 0.0
    %589 = vmatpush.msra.mxu0 0.0
    %590 = vmatpush.msra.mxu0 0.0
    %591 = vmatpush.msra.mxu0 %v571
    %592 = vmatmul.f32.gmra.mxu0 %v574
    %v593 = vpop.f32.mrf.mxu0
    %v594 = vadd.f32 0.0, %v593
    %595 = vdwg.mxu0
    %596 = vrot.lane.b32.xlu0 %v147, 112
    %v597 = vpop.permute.xlu0 %596
    %v600 = vsel %vm198, %v513, 0
    %602 = vmatpush.msra.mxu0 0.0
    %603 = vmatpush.msra.mxu0 0.0
    %604 = vmatpush.msra.mxu0 0.0
    %605 = vmatpush.msra.mxu0 0.0
    %606 = vmatpush.msra.mxu0 0.0
    %607 = vmatpush.msra.mxu0 0.0
    %608 = vmatpush.msra.mxu0 0.0
    %609 = vmatpush.msra.mxu0 0.0
    %610 = vmatpush.msra.mxu0 0.0
    %611 = vmatpush.msra.mxu0 0.0
    %612 = vmatpush.msra.mxu0 0.0
    %613 = vmatpush.msra.mxu0 0.0
    %614 = vmatpush.msra.mxu0 0.0
    %615 = vmatpush.msra.mxu0 0.0
    %616 = vmatpush.msra.mxu0 0.0
    %617 = vmatpush.msra.mxu0 %v597
    %618 = vmatmul.f32.gmra.mxu0 %v600
    %v619 = vpop.f32.mrf.mxu0
    %v620 = vadd.f32 0.0, %v619
    %621 = vdwg.mxu0
    %622 = vrot.lane.b32.xlu0 %v167, 112
    %v623 = vpop.permute.xlu0 %622
    %v626 = vsel %vm198, %v514, 0
    %628 = vmatpush.msra.mxu0 0.0
    %629 = vmatpush.msra.mxu0 0.0
    %630 = vmatpush.msra.mxu0 0.0
    %631 = vmatpush.msra.mxu0 0.0
    %632 = vmatpush.msra.mxu0 0.0
    %633 = vmatpush.msra.mxu0 0.0
    %634 = vmatpush.msra.mxu0 0.0
    %635 = vmatpush.msra.mxu0 0.0
    %636 = vmatpush.msra.mxu0 0.0
    %637 = vmatpush.msra.mxu0 0.0
    %638 = vmatpush.msra.mxu0 0.0
    %639 = vmatpush.msra.mxu0 0.0
    %640 = vmatpush.msra.mxu0 0.0
    %641 = vmatpush.msra.mxu0 0.0
    %642 = vmatpush.msra.mxu0 0.0
    %643 = vmatpush.msra.mxu0 %v623
    %644 = vmatmul.f32.gmra.mxu0 %v626
    %v645 = vpop.f32.mrf.mxu0
    %v646 = vadd.f32 0.0, %v645
    %647 = vdwg.mxu0
    %648 = vrot.lane.b32.xlu0 %v170, 112
    %v649 = vpop.permute.xlu0 %648
    %v652 = vsel %vm198, %v515, 0
    %654 = vmatpush.msra.mxu0 0.0
    %655 = vmatpush.msra.mxu0 0.0
    %656 = vmatpush.msra.mxu0 0.0
    %657 = vmatpush.msra.mxu0 0.0
    %658 = vmatpush.msra.mxu0 0.0
    %659 = vmatpush.msra.mxu0 0.0
    %660 = vmatpush.msra.mxu0 0.0
    %661 = vmatpush.msra.mxu0 0.0
    %662 = vmatpush.msra.mxu0 0.0
    %663 = vmatpush.msra.mxu0 0.0
    %664 = vmatpush.msra.mxu0 0.0
    %665 = vmatpush.msra.mxu0 0.0
    %666 = vmatpush.msra.mxu0 0.0
    %667 = vmatpush.msra.mxu0 0.0
    %668 = vmatpush.msra.mxu0 0.0
    %669 = vmatpush.msra.mxu0 %v649
    %670 = vmatmul.f32.gmra.mxu0 %v652
    %v671 = vpop.f32.mrf.mxu0
    %v672 = vadd.f32 0.0, %v671
    %673 = vdwg.mxu0
    %674 = vrot.lane.b32.xlu0 %v190, 112
    %v675 = vpop.permute.xlu0 %674
    %v678 = vsel %vm198, %v516, 0
    %680 = vmatpush.msra.mxu0 0.0
    %681 = vmatpush.msra.mxu0 0.0
    %682 = vmatpush.msra.mxu0 0.0
    %683 = vmatpush.msra.mxu0 0.0
    %684 = vmatpush.msra.mxu0 0.0
    %685 = vmatpush.msra.mxu0 0.0
    %686 = vmatpush.msra.mxu0 0.0
    %687 = vmatpush.msra.mxu0 0.0
    %688 = vmatpush.msra.mxu0 0.0
    %689 = vmatpush.msra.mxu0 0.0
    %690 = vmatpush.msra.mxu0 0.0
    %691 = vmatpush.msra.mxu0 0.0
    %692 = vmatpush.msra.mxu0 0.0
    %693 = vmatpush.msra.mxu0 0.0
    %694 = vmatpush.msra.mxu0 0.0
    %695 = vmatpush.msra.mxu0 %v675
    %696 = vmatmul.f32.gmra.mxu0 %v678
    %v697 = vpop.f32.mrf.mxu0
    %v698 = vadd.f32 0.0, %v697
    %699 = vdwg.mxu0
    %700 = vrot.lane.b32.xlu0 %v193, 112
    %v701 = vpop.permute.xlu0 %700
    %v704 = vsel %vm198, %v517, 0
    %706 = vmatpush.msra.mxu0 0.0
    %707 = vmatpush.msra.mxu0 0.0
    %708 = vmatpush.msra.mxu0 0.0
    %709 = vmatpush.msra.mxu0 0.0
    %710 = vmatpush.msra.mxu0 0.0
    %711 = vmatpush.msra.mxu0 0.0
    %712 = vmatpush.msra.mxu0 0.0
    %713 = vmatpush.msra.mxu0 0.0
    %714 = vmatpush.msra.mxu0 0.0
    %715 = vmatpush.msra.mxu0 0.0
    %716 = vmatpush.msra.mxu0 0.0
    %717 = vmatpush.msra.mxu0 0.0
    %718 = vmatpush.msra.mxu0 0.0
    %719 = vmatpush.msra.mxu0 0.0
    %720 = vmatpush.msra.mxu0 0.0
    %721 = vmatpush.msra.mxu0 %v701
    %722 = vmatmul.f32.gmra.mxu0 %v704
    %v723 = vpop.f32.mrf.mxu0
    %v724 = vadd.f32 0.0, %v723
    %725 = vdwg.mxu0
    %v727 = vsel %vm198, %v542, 0
    %v730 = vsel %vm198, %v568, 0
    %732 = vmatpush.msra.mxu0 0.0
    %733 = vmatpush.msra.mxu0 0.0
    %734 = vmatpush.msra.mxu0 0.0
    %735 = vmatpush.msra.mxu0 0.0
    %736 = vmatpush.msra.mxu0 0.0
    %737 = vmatpush.msra.mxu0 0.0
    %738 = vmatpush.msra.mxu0 0.0
    %739 = vmatpush.msra.mxu0 0.0
    %740 = vmatpush.msra.mxu0 0.0
    %741 = vmatpush.msra.mxu0 0.0
    %742 = vmatpush.msra.mxu0 0.0
    %743 = vmatpush.msra.mxu0 0.0
    %744 = vmatpush.msra.mxu0 0.0
    %745 = vmatpush.msra.mxu0 0.0
    %746 = vmatpush.msra.mxu0 0.0
    %747 = vmatpush.msra.mxu0 %v73
    %748 = vmatmul.f32.gmra.mxu0 %v727
    %v749 = vpop.f32.mrf.mxu0
    %v750 = vadd.f32 0.0, %v749
    %751 = vmatmul.f32.gmra.mxu0 %v730
    %v752 = vpop.f32.mrf.mxu0
    %v753 = vadd.f32 0.0, %v752
    %754 = vdwg.mxu0
    %v756 = vsel %vm198, %v594, 0
    %v759 = vsel %vm198, %v620, 0
    %761 = vmatpush.msra.mxu0 0.0
    %762 = vmatpush.msra.mxu0 0.0
    %763 = vmatpush.msra.mxu0 0.0
    %764 = vmatpush.msra.mxu0 0.0
    %765 = vmatpush.msra.mxu0 0.0
    %766 = vmatpush.msra.mxu0 0.0
    %767 = vmatpush.msra.mxu0 0.0
    %768 = vmatpush.msra.mxu0 0.0
    %769 = vmatpush.msra.mxu0 0.0
    %770 = vmatpush.msra.mxu0 0.0
    %771 = vmatpush.msra.mxu0 0.0
    %772 = vmatpush.msra.mxu0 0.0
    %773 = vmatpush.msra.mxu0 0.0
    %774 = vmatpush.msra.mxu0 0.0
    %775 = vmatpush.msra.mxu0 0.0
    %776 = vmatpush.msra.mxu0 %v74
    %777 = vmatmul.f32.gmra.mxu0 %v756
    %v778 = vpop.f32.mrf.mxu0
    %v779 = vadd.f32 0.0, %v778
    %780 = vmatmul.f32.gmra.mxu0 %v759
    %v781 = vpop.f32.mrf.mxu0
    %v782 = vadd.f32 0.0, %v781
    %783 = vdwg.mxu0
    %v785 = vsel %vm198, %v646, 0
    %v788 = vsel %vm198, %v672, 0
    %790 = vmatpush.msra.mxu0 0.0
    %791 = vmatpush.msra.mxu0 0.0
    %792 = vmatpush.msra.mxu0 0.0
    %793 = vmatpush.msra.mxu0 0.0
    %794 = vmatpush.msra.mxu0 0.0
    %795 = vmatpush.msra.mxu0 0.0
    %796 = vmatpush.msra.mxu0 0.0
    %797 = vmatpush.msra.mxu0 0.0
    %798 = vmatpush.msra.mxu0 0.0
    %799 = vmatpush.msra.mxu0 0.0
    %800 = vmatpush.msra.mxu0 0.0
    %801 = vmatpush.msra.mxu0 0.0
    %802 = vmatpush.msra.mxu0 0.0
    %803 = vmatpush.msra.mxu0 0.0
    %804 = vmatpush.msra.mxu0 0.0
    %805 = vmatpush.msra.mxu0 %v75
    %806 = vmatmul.f32.gmra.mxu0 %v785
    %v807 = vpop.f32.mrf.mxu0
    %v808 = vadd.f32 0.0, %v807
    %809 = vmatmul.f32.gmra.mxu0 %v788
    %v810 = vpop.f32.mrf.mxu0
    %v811 = vadd.f32 0.0, %v810
    %812 = vdwg.mxu0
    %v814 = vsel %vm198, %v698, 0
    %v817 = vsel %vm198, %v724, 0
    %819 = vmatpush.msra.mxu0 0.0
    %820 = vmatpush.msra.mxu0 0.0
    %821 = vmatpush.msra.mxu0 0.0
    %822 = vmatpush.msra.mxu0 0.0
    %823 = vmatpush.msra.mxu0 0.0
    %824 = vmatpush.msra.mxu0 0.0
    %825 = vmatpush.msra.mxu0 0.0
    %826 = vmatpush.msra.mxu0 0.0
    %827 = vmatpush.msra.mxu0 0.0
    %828 = vmatpush.msra.mxu0 0.0
    %829 = vmatpush.msra.mxu0 0.0
    %830 = vmatpush.msra.mxu0 0.0
    %831 = vmatpush.msra.mxu0 0.0
    %832 = vmatpush.msra.mxu0 0.0
    %833 = vmatpush.msra.mxu0 0.0
    %834 = vmatpush.msra.mxu0 %v76
    %835 = vmatmul.f32.gmra.mxu0 %v814
    %v836 = vpop.f32.mrf.mxu0
    %v837 = vadd.f32 0.0, %v836
    %838 = vmatmul.f32.gmra.mxu0 %v817
    %v839 = vpop.f32.mrf.mxu0
    %v840 = vadd.f32 0.0, %v839
    %841 = vdwg.mxu0
    %v842 = vsel %vm96, %v750, 0.0
    %v843 = vsel %vm96, %v779, 0.0
    %v844 = vadd.f32 %v842, %v843
    %v845 = vsel %vm96, %v808, 0.0
    %v846 = vadd.f32 %v844, %v845
    %v847 = vsel %vm96, %v837, 0.0
    %v848 = vadd.f32 %v846, %v847
    %v849 = vsel %vm96, %v753, 0.0
    %v850 = vsel %vm96, %v782, 0.0
    %v851 = vadd.f32 %v849, %v850
    %v852 = vsel %vm96, %v811, 0.0
    %v853 = vadd.f32 %v851, %v852
    %v854 = vsel %vm96, %v840, 0.0
    %v855 = vadd.f32 %v853, %v854
    %v856 = vperm.slane %v89, 0
    %v857 = vadd.f32 %v848, %v856
    %v858 = vadd.f32 %v855, %v856
    %v859 = vadd.f32 %v857, %v30
    %v860 = vadd.f32 %v858, %v31
    %v861 = vsel %vm96, %v859, 0.0
    %862 = vadd.xlane.f32.xlu0 %v861
    %v863 = vpop.xlane.xlu0 %862
    %v864 = vsel %vm96, %v860, 0.0
    %865 = vadd.xlane.f32.xlu0 %v864
    %v866 = vpop.xlane.xlu0 %865
    %v867 = vrcp.pop 32.0
    %v868 = vmul.f32 32.0, %v867
    %v869 = vsub.f32 1.0, %v868
    %v870 = vmul.f32 %v867, %v869
    %v871 = vadd.f32 %v867, %v870
    %vm872 = vweird.f32 %v867
    %v873 = vsel %vm872, %v867, %v871
    %v874 = vmul.f32 %v863, %v873
    %v875 = vmul.f32 %v866, %v873
    %v876 = vsub.f32 %v859, %v874
    %v877 = vsub.f32 %v860, %v875
    %v878 = vmul.f32 %v876, %v876
    %v879 = vmul.f32 %v877, %v877
    %v880 = vsel %vm96, %v878, 0.0
    %881 = vadd.xlane.f32.xlu0 %v880
    %v882 = vpop.xlane.xlu0 %881
    %v883 = vsel %vm96, %v879, 0.0
    %884 = vadd.xlane.f32.xlu0 %v883
    %v885 = vpop.xlane.xlu0 %884
    %v886 = vmul.f32 %v882, %v873
    %v887 = vmul.f32 %v885, %v873
    %v888 = vadd.f32 %v886, 1e-05
    %v889 = vadd.f32 %v887, 1e-05
    %v890 = vrsqrt.pop %v888
    %v891 = vmul.f32 %v890, %v888
    %v892 = vmul.f32 %v891, %v890
    %v893 = vmul.f32 0.5, %v892
    %v894 = vsub.f32 1.5, %v893
    %v895 = vmul.f32 %v890, %v894
    %vm896 = vweird.f32 %v888
    %vm897 = vweird.f32 %v890
    %vm898 = vmor %vm896, %vm897
    %v899 = vsel %vm898, %v890, %v895
    %v900 = vrsqrt.pop %v889
    %v901 = vmul.f32 %v900, %v889
    %v902 = vmul.f32 %v901, %v900
    %v903 = vmul.f32 0.5, %v902
    %v904 = vsub.f32 1.5, %v903
    %v905 = vmul.f32 %v900, %v904
    %vm906 = vweird.f32 %v889
    %vm907 = vweird.f32 %v900
    %vm908 = vmor %vm906, %vm907
    %v909 = vsel %vm908, %v900, %v905
    %v910 = vmul.f32 %v876, %v899
    %v911 = vmul.f32 %v877, %v909
    %v912 = vperm.slane %v90, 0
    %v913 = vmul.f32 %v910, %v912
    %v914 = vmul.f32 %v911, %v912
    %v915 = vperm.slane %v91, 0
    %v916 = vadd.f32 %v913, %v915
    %v917 = vadd.f32 %v914, %v915
    %v918 = vperm.slane %v95, 0
    %v920 = vsel %vm96, %v916, 0
    %v923 = vsel %vm96, %v917, 0
    %925 = vmatpush.msra.mxu0 0.0
    %926 = vmatpush.msra.mxu0 0.0
    %927 = vmatpush.msra.mxu0 0.0
    %928 = vmatpush.msra.mxu0 0.0
    %929 = vmatpush.msra.mxu0 0.0
    %930 = vmatpush.msra.mxu0 0.0
    %931 = vmatpush.msra.mxu0 0.0
    %932 = vmatpush.msra.mxu0 0.0
    %933 = vmatpush.msra.mxu0 0.0
    %934 = vmatpush.msra.mxu0 0.0
    %935 = vmatpush.msra.mxu0 0.0
    %936 = vmatpush.msra.mxu0 0.0
    %937 = vmatpush.msra.mxu0 %v80
    %938 = vmatpush.msra.mxu0 %v79
    %939 = vmatpush.msra.mxu0 %v78
    %940 = vmatpush.msra.mxu0 %v77
    %941 = vmatmul.f32.gmra.mxu0 %v920
    %v942 = vpop.f32.mrf.mxu0
    %v943 = vadd.f32 %v918, %v942
    %944 = vmatmul.f32.gmra.mxu0 %v923
    %v945 = vpop.f32.mrf.mxu0
    %v946 = vadd.f32 %v918, %v945
    %947 = vdwg.mxu0
    %v948 = vmax.f32 %v943, 0.0
    %v949 = vmax.f32 %v946, 0.0
    %v950 = vperm.slane %v94, 0
    %vm951 = vcmask 523264
    %v953 = vsel %vm951, %v948, 0
    %v956 = vsel %vm951, %v949, 0
    %958 = vmatpush.msra.mxu0 0.0
    %959 = vmatpush.msra.mxu0 0.0
    %960 = vmatpush.msra.mxu0 0.0
    %961 = vmatpush.msra.mxu0 0.0
    %962 = vmatpush.msra.mxu0 0.0
    %963 = vmatpush.msra.mxu0 0.0
    %964 = vmatpush.msra.mxu0 0.0
    %965 = vmatpush.msra.mxu0 0.0
    %966 = vmatpush.msra.mxu0 %v88
    %967 = vmatpush.msra.mxu0 %v87
    %968 = vmatpush.msra.mxu0 %v86
    %969 = vmatpush.msra.mxu0 %v85
    %970 = vmatpush.msra.mxu0 %v84
    %971 = vmatpush.msra.mxu0 %v83
    %972 = vmatpush.msra.mxu0 %v82
    %973 = vmatpush.msra.mxu0 %v81
    %974 = vmatmul.f32.gmra.mxu0 %v953
    %v975 = vpop.f32.mrf.mxu0
    %v976 = vadd.f32 %v950, %v975
    %977 = vmatmul.f32.gmra.mxu0 %v956
    %v978 = vpop.f32.mrf.mxu0
    %v979 = vadd.f32 %v950, %v978
    %980 = vdwg.mxu0
    %v981 = vadd.f32 %v976, %v916
    %v982 = vadd.f32 %v979, %v917
    %v983 = vsel %vm96, %v981, 0.0
    %984 = vadd.xlane.f32.xlu0 %v983
    %v985 = vpop.xlane.xlu0 %984
    %v986 = vsel %vm96, %v982, 0.0
    %987 = vadd.xlane.f32.xlu0 %v986
    %v988 = vpop.xlane.xlu0 %987
    %v989 = vmul.f32 %v985, %v873
    %v990 = vmul.f32 %v988, %v873
    %v991 = vsub.f32 %v981, %v989
    %v992 = vsub.f32 %v982, %v990
    %v993 = vmul.f32 %v991, %v991
    %v994 = vmul.f32 %v992, %v992
    %v995 = vsel %vm96, %v993, 0.0
    %996 = vadd.xlane.f32.xlu0 %v995
    %v997 = vpop.xlane.xlu0 %996
    %v998 = vsel %vm96, %v994, 0.0
    %999 = vadd.xlane.f32.xlu0 %v998
    %v1000 = vpop.xlane.xlu0 %999
    %v1001 = vmul.f32 %v997, %v873
    %v1002 = vmul.f32 %v1000, %v873
    %v1003 = vadd.f32 %v1001, 1e-05
    %v1004 = vadd.f32 %v1002, 1e-05
    %v1005 = vrsqrt.pop %v1003
    %v1006 = vmul.f32 %v1005, %v1003
    %v1007 = vmul.f32 %v1006, %v1005
    %v1008 = vmul.f32 0.5, %v1007
    %v1009 = vsub.f32 1.5, %v1008
    %v1010 = vmul.f32 %v1005, %v1009
    %vm1011 = vweird.f32 %v1003
    %vm1012 = vweird.f32 %v1005
    %vm1013 = vmor %vm1011, %vm1012
    %v1014 = vsel %vm1013, %v1005, %v1010
    %v1015 = vrsqrt.pop %v1004
    %v1016 = vmul.f32 %v1015, %v1004
    %v1017 = vmul.f32 %v1016, %v1015
    %v1018 = vmul.f32 0.5, %v1017
    %v1019 = vsub.f32 1.5, %v1018
    %v1020 = vmul.f32 %v1015, %v1019
    %vm1021 = vweird.f32 %v1004
    %vm1022 = vweird.f32 %v1015
    %vm1023 = vmor %vm1021, %vm1022
    %v1024 = vsel %vm1023, %v1015, %v1020
    %v1025 = vmul.f32 %v991, %v1014
    %v1026 = vmul.f32 %v992, %v1024
    %v1027 = vperm.slane %v92, 0
    %v1028 = vmul.f32 %v1025, %v1027
    %v1029 = vmul.f32 %v1026, %v1027
    %v1030 = vperm.slane %v93, 0
    %v1031 = vadd.f32 %v1028, %v1030
    %v1032 = vadd.f32 %v1029, %v1030
    %s1033 = scalar_lea.vmem %s3, 128
    %v1034 = vld [vmem:[%s1033] sm:$0xff]
    %v1035 = vld [vmem:[%s1033 + $0x8] sm:$0xff]
    %v1036 = vld [vmem:[%s1033 + $0x10] sm:$0xff]
    %v1037 = vld [vmem:[%s1033 + $0x18] sm:$0xff]
    %v1038 = vld [vmem:[%s1033 + $0x20] sm:$0xff]
    %v1039 = vld [vmem:[%s1033 + $0x28] sm:$0xff]
    %v1040 = vld [vmem:[%s1033 + $0x30] sm:$0xff]
    %v1041 = vld [vmem:[%s1033 + $0x38] sm:$0xff]
    %v1042 = vld [vmem:[%s1033 + $0x40] sm:$0xff]
    %v1043 = vld [vmem:[%s1033 + $0x48] sm:$0xff]
    %v1044 = vld [vmem:[%s1033 + $0x50] sm:$0xff]
    %v1045 = vld [vmem:[%s1033 + $0x58] sm:$0xff]
    %v1046 = vld [vmem:[%s1033 + $0x60] sm:$0xff]
    %v1047 = vld [vmem:[%s1033 + $0x68] sm:$0xff]
    %v1048 = vld [vmem:[%s1033 + $0x70] sm:$0xff]
    %v1049 = vld [vmem:[%s1033 + $0x78] sm:$0xff]
    %s1050 = scalar_lea.vmem %s4, 32
    %v1051 = vld [vmem:[%s1050] sm:$0xff]
    %v1052 = vld [vmem:[%s1050 + $0x8] sm:$0xff]
    %v1053 = vld [vmem:[%s1050 + $0x10] sm:$0xff]
    %v1054 = vld [vmem:[%s1050 + $0x18] sm:$0xff]
    %s1055 = scalar_lea.vmem %s5, 32
    %v1056 = vld [vmem:[%s1055] sm:$0xff]
    %v1057 = vld [vmem:[%s1055 + $0x8] sm:$0xff]
    %v1058 = vld [vmem:[%s1055 + $0x10] sm:$0xff]
    %v1059 = vld [vmem:[%s1055 + $0x18] sm:$0xff]
    %s1060 = scalar_lea.vmem %s6, 64
    %v1061 = vld [vmem:[%s1060] sm:$0xff]
    %v1062 = vld [vmem:[%s1060 + $0x8] sm:$0xff]
    %v1063 = vld [vmem:[%s1060 + $0x10] sm:$0xff]
    %v1064 = vld [vmem:[%s1060 + $0x18] sm:$0xff]
    %v1065 = vld [vmem:[%s1060 + $0x20] sm:$0xff]
    %v1066 = vld [vmem:[%s1060 + $0x28] sm:$0xff]
    %v1067 = vld [vmem:[%s1060 + $0x30] sm:$0xff]
    %v1068 = vld [vmem:[%s1060 + $0x38] sm:$0xff]
    %s1069 = scalar_lea.vmem %s7, 8
    %v1070 = vld [vmem:[%s1069] sm:$0x1]
    %v1071 = vld [vmem:[%s1069 + $0x1] sm:$0x1]
    %v1072 = vld [vmem:[%s1069 + $0x2] sm:$0x1]
    %v1073 = vld [vmem:[%s1069 + $0x3] sm:$0x1]
    %v1074 = vld [vmem:[%s1069 + $0x4] sm:$0x1]
    %v1075 = vld [vmem:[%s1069 + $0x5] sm:$0x1]
    %v1076 = vld [vmem:[%s1069 + $0x6] sm:$0x1]
    %v1078 = vsel %vm96, %v1031, 0
    %v1081 = vsel %vm96, %v1032, 0
    %1083 = vmatpush.msra.mxu0 0.0
    %1084 = vmatpush.msra.mxu0 0.0
    %1085 = vmatpush.msra.mxu0 0.0
    %1086 = vmatpush.msra.mxu0 0.0
    %1087 = vmatpush.msra.mxu0 0.0
    %1088 = vmatpush.msra.mxu0 0.0
    %1089 = vmatpush.msra.mxu0 0.0
    %1090 = vmatpush.msra.mxu0 0.0
    %1091 = vmatpush.msra.mxu0 0.0
    %1092 = vmatpush.msra.mxu0 0.0
    %1093 = vmatpush.msra.mxu0 0.0
    %1094 = vmatpush.msra.mxu0 0.0
    %1095 = vmatpush.msra.mxu0 %v1037
    %1096 = vmatpush.msra.mxu0 %v1036
    %1097 = vmatpush.msra.mxu0 %v1035
    %1098 = vmatpush.msra.mxu0 %v1034
    %1099 = vmatmul.f32.gmra.mxu0 %v1078
    %v1100 = vpop.f32.mrf.mxu0
    %v1101 = vadd.f32 0.0, %v1100
    %1102 = vmatmul.f32.gmra.mxu0 %v1081
    %v1103 = vpop.f32.mrf.mxu0
    %v1104 = vadd.f32 0.0, %v1103
    %1105 = vdwg.mxu0
    %1106 = vmatpush.msra.mxu0 0.0
    %1107 = vmatpush.msra.mxu0 0.0
    %1108 = vmatpush.msra.mxu0 0.0
    %1109 = vmatpush.msra.mxu0 0.0
    %1110 = vmatpush.msra.mxu0 0.0
    %1111 = vmatpush.msra.mxu0 0.0
    %1112 = vmatpush.msra.mxu0 0.0
    %1113 = vmatpush.msra.mxu0 0.0
    %1114 = vmatpush.msra.mxu0 0.0
    %1115 = vmatpush.msra.mxu0 0.0
    %1116 = vmatpush.msra.mxu0 0.0
    %1117 = vmatpush.msra.mxu0 0.0
    %1118 = vmatpush.msra.mxu0 %v1041
    %1119 = vmatpush.msra.mxu0 %v1040
    %1120 = vmatpush.msra.mxu0 %v1039
    %1121 = vmatpush.msra.mxu0 %v1038
    %1122 = vmatmul.f32.gmra.mxu0 %v1078
    %v1123 = vpop.f32.mrf.mxu0
    %v1124 = vadd.f32 0.0, %v1123
    %1125 = vmatmul.f32.gmra.mxu0 %v1081
    %v1126 = vpop.f32.mrf.mxu0
    %v1127 = vadd.f32 0.0, %v1126
    %1128 = vdwg.mxu0
    %1129 = vmatpush.msra.mxu0 0.0
    %1130 = vmatpush.msra.mxu0 0.0
    %1131 = vmatpush.msra.mxu0 0.0
    %1132 = vmatpush.msra.mxu0 0.0
    %1133 = vmatpush.msra.mxu0 0.0
    %1134 = vmatpush.msra.mxu0 0.0
    %1135 = vmatpush.msra.mxu0 0.0
    %1136 = vmatpush.msra.mxu0 0.0
    %1137 = vmatpush.msra.mxu0 0.0
    %1138 = vmatpush.msra.mxu0 0.0
    %1139 = vmatpush.msra.mxu0 0.0
    %1140 = vmatpush.msra.mxu0 0.0
    %1141 = vmatpush.msra.mxu0 %v1045
    %1142 = vmatpush.msra.mxu0 %v1044
    %1143 = vmatpush.msra.mxu0 %v1043
    %1144 = vmatpush.msra.mxu0 %v1042
    %1145 = vmatmul.f32.gmra.mxu0 %v1078
    %v1146 = vpop.f32.mrf.mxu0
    %v1147 = vadd.f32 0.0, %v1146
    %1148 = vmatmul.f32.gmra.mxu0 %v1081
    %v1149 = vpop.f32.mrf.mxu0
    %v1150 = vadd.f32 0.0, %v1149
    %1151 = vdwg.mxu0
    %1152 = vmatpush.msra.mxu0 0.0
    %1153 = vmatpush.msra.mxu0 0.0
    %1154 = vmatpush.msra.mxu0 0.0
    %1155 = vmatpush.msra.mxu0 0.0
    %1156 = vmatpush.msra.mxu0 0.0
    %1157 = vmatpush.msra.mxu0 0.0
    %1158 = vmatpush.msra.mxu0 0.0
    %1159 = vmatpush.msra.mxu0 0.0
    %1160 = vmatpush.msra.mxu0 0.0
    %1161 = vmatpush.msra.mxu0 0.0
    %1162 = vmatpush.msra.mxu0 0.0
    %1163 = vmatpush.msra.mxu0 0.0
    %1164 = vmatpush.msra.mxu0 %v1049
    %1165 = vmatpush.msra.mxu0 %v1048
    %1166 = vmatpush.msra.mxu0 %v1047
    %1167 = vmatpush.msra.mxu0 %v1046
    %1168 = vmatmul.f32.gmra.mxu0 %v1078
    %v1169 = vpop.f32.mrf.mxu0
    %v1170 = vadd.f32 0.0, %v1169
    %1171 = vmatmul.f32.gmra.mxu0 %v1081
    %v1172 = vpop.f32.mrf.mxu0
    %v1173 = vadd.f32 0.0, %v1172
    %1174 = vdwg.mxu0
    %1176 = vrot.lane.b32.xlu0 %v1101, 120
    %v1177 = vpop.permute.xlu0 %1176
    %v1178 = vsel %vm198, %v1101, 0
    %v1180 = vsel %vm198, %v1177, 0
    %1182 = vmatpush.xpose.msra.mxu0 0.0
    %1183 = vmatpush.xpose.msra.mxu0 0.0
    %1184 = vmatpush.xpose.msra.mxu0 0.0
    %1185 = vmatpush.xpose.msra.mxu0 0.0
    %1186 = vmatpush.xpose.msra.mxu0 0.0
    %1187 = vmatpush.xpose.msra.mxu0 0.0
    %1188 = vmatpush.xpose.msra.mxu0 0.0
    %1189 = vmatpush.xpose.msra.mxu0 0.0
    %1190 = vmatpush.xpose.msra.mxu0 0.0
    %1191 = vmatpush.xpose.msra.mxu0 0.0
    %1192 = vmatpush.xpose.msra.mxu0 0.0
    %1193 = vmatpush.xpose.msra.mxu0 0.0
    %1194 = vmatpush.xpose.msra.mxu0 0.0
    %1195 = vmatpush.xpose.msra.mxu0 0.0
    %1196 = vmatpush.xpose.msra.mxu0 0.0
    %1197 = vmatpush.xpose.msra.mxu0 %v1180
    %1198 = vmatmul.f32.gmra.mxu0 %v1178
    %v1199 = vpop.f32.mrf.mxu0
    %v1200 = vadd.f32 0.0, %v1199
    %1201 = vdwg.mxu0
    %1203 = vrot.lane.b32.xlu0 %v1104, 120
    %v1204 = vpop.permute.xlu0 %1203
    %v1205 = vsel %vm198, %v1104, 0
    %v1207 = vsel %vm198, %v1204, 0
    %1209 = vmatpush.xpose.msra.mxu0 0.0
    %1210 = vmatpush.xpose.msra.mxu0 0.0
    %1211 = vmatpush.xpose.msra.mxu0 0.0
    %1212 = vmatpush.xpose.msra.mxu0 0.0
    %1213 = vmatpush.xpose.msra.mxu0 0.0
    %1214 = vmatpush.xpose.msra.mxu0 0.0
    %1215 = vmatpush.xpose.msra.mxu0 0.0
    %1216 = vmatpush.xpose.msra.mxu0 0.0
    %1217 = vmatpush.xpose.msra.mxu0 0.0
    %1218 = vmatpush.xpose.msra.mxu0 0.0
    %1219 = vmatpush.xpose.msra.mxu0 0.0
    %1220 = vmatpush.xpose.msra.mxu0 0.0
    %1221 = vmatpush.xpose.msra.mxu0 0.0
    %1222 = vmatpush.xpose.msra.mxu0 0.0
    %1223 = vmatpush.xpose.msra.mxu0 0.0
    %1224 = vmatpush.xpose.msra.mxu0 %v1207
    %1225 = vmatmul.f32.gmra.mxu0 %v1205
    %v1226 = vpop.f32.mrf.mxu0
    %v1227 = vadd.f32 0.0, %v1226
    %1228 = vdwg.mxu0
    %1230 = vrot.lane.b32.xlu0 %v1124, 120
    %v1231 = vpop.permute.xlu0 %1230
    %v1232 = vsel %vm198, %v1124, 0
    %v1234 = vsel %vm198, %v1231, 0
    %1236 = vmatpush.xpose.msra.mxu0 0.0
    %1237 = vmatpush.xpose.msra.mxu0 0.0
    %1238 = vmatpush.xpose.msra.mxu0 0.0
    %1239 = vmatpush.xpose.msra.mxu0 0.0
    %1240 = vmatpush.xpose.msra.mxu0 0.0
    %1241 = vmatpush.xpose.msra.mxu0 0.0
    %1242 = vmatpush.xpose.msra.mxu0 0.0
    %1243 = vmatpush.xpose.msra.mxu0 0.0
    %1244 = vmatpush.xpose.msra.mxu0 0.0
    %1245 = vmatpush.xpose.msra.mxu0 0.0
    %1246 = vmatpush.xpose.msra.mxu0 0.0
    %1247 = vmatpush.xpose.msra.mxu0 0.0
    %1248 = vmatpush.xpose.msra.mxu0 0.0
    %1249 = vmatpush.xpose.msra.mxu0 0.0
    %1250 = vmatpush.xpose.msra.mxu0 0.0
    %1251 = vmatpush.xpose.msra.mxu0 %v1234
    %1252 = vmatmul.f32.gmra.mxu0 %v1232
    %v1253 = vpop.f32.mrf.mxu0
    %v1254 = vadd.f32 0.0, %v1253
    %1255 = vdwg.mxu0
    %1257 = vrot.lane.b32.xlu0 %v1127, 120
    %v1258 = vpop.permute.xlu0 %1257
    %v1259 = vsel %vm198, %v1127, 0
    %v1261 = vsel %vm198, %v1258, 0
    %1263 = vmatpush.xpose.msra.mxu0 0.0
    %1264 = vmatpush.xpose.msra.mxu0 0.0
    %1265 = vmatpush.xpose.msra.mxu0 0.0
    %1266 = vmatpush.xpose.msra.mxu0 0.0
    %1267 = vmatpush.xpose.msra.mxu0 0.0
    %1268 = vmatpush.xpose.msra.mxu0 0.0
    %1269 = vmatpush.xpose.msra.mxu0 0.0
    %1270 = vmatpush.xpose.msra.mxu0 0.0
    %1271 = vmatpush.xpose.msra.mxu0 0.0
    %1272 = vmatpush.xpose.msra.mxu0 0.0
    %1273 = vmatpush.xpose.msra.mxu0 0.0
    %1274 = vmatpush.xpose.msra.mxu0 0.0
    %1275 = vmatpush.xpose.msra.mxu0 0.0
    %1276 = vmatpush.xpose.msra.mxu0 0.0
    %1277 = vmatpush.xpose.msra.mxu0 0.0
    %1278 = vmatpush.xpose.msra.mxu0 %v1261
    %1279 = vmatmul.f32.gmra.mxu0 %v1259
    %v1280 = vpop.f32.mrf.mxu0
    %v1281 = vadd.f32 0.0, %v1280
    %1282 = vdwg.mxu0
    %1284 = vrot.lane.b32.xlu0 %v1147, 120
    %v1285 = vpop.permute.xlu0 %1284
    %v1286 = vsel %vm198, %v1147, 0
    %v1288 = vsel %vm198, %v1285, 0
    %1290 = vmatpush.xpose.msra.mxu0 0.0
    %1291 = vmatpush.xpose.msra.mxu0 0.0
    %1292 = vmatpush.xpose.msra.mxu0 0.0
    %1293 = vmatpush.xpose.msra.mxu0 0.0
    %1294 = vmatpush.xpose.msra.mxu0 0.0
    %1295 = vmatpush.xpose.msra.mxu0 0.0
    %1296 = vmatpush.xpose.msra.mxu0 0.0
    %1297 = vmatpush.xpose.msra.mxu0 0.0
    %1298 = vmatpush.xpose.msra.mxu0 0.0
    %1299 = vmatpush.xpose.msra.mxu0 0.0
    %1300 = vmatpush.xpose.msra.mxu0 0.0
    %1301 = vmatpush.xpose.msra.mxu0 0.0
    %1302 = vmatpush.xpose.msra.mxu0 0.0
    %1303 = vmatpush.xpose.msra.mxu0 0.0
    %1304 = vmatpush.xpose.msra.mxu0 0.0
    %1305 = vmatpush.xpose.msra.mxu0 %v1288
    %1306 = vmatmul.f32.gmra.mxu0 %v1286
    %v1307 = vpop.f32.mrf.mxu0
    %v1308 = vadd.f32 0.0, %v1307
    %1309 = vdwg.mxu0
    %1311 = vrot.lane.b32.xlu0 %v1150, 120
    %v1312 = vpop.permute.xlu0 %1311
    %v1313 = vsel %vm198, %v1150, 0
    %v1315 = vsel %vm198, %v1312, 0
    %1317 = vmatpush.xpose.msra.mxu0 0.0
    %1318 = vmatpush.xpose.msra.mxu0 0.0
    %1319 = vmatpush.xpose.msra.mxu0 0.0
    %1320 = vmatpush.xpose.msra.mxu0 0.0
    %1321 = vmatpush.xpose.msra.mxu0 0.0
    %1322 = vmatpush.xpose.msra.mxu0 0.0
    %1323 = vmatpush.xpose.msra.mxu0 0.0
    %1324 = vmatpush.xpose.msra.mxu0 0.0
    %1325 = vmatpush.xpose.msra.mxu0 0.0
    %1326 = vmatpush.xpose.msra.mxu0 0.0
    %1327 = vmatpush.xpose.msra.mxu0 0.0
    %1328 = vmatpush.xpose.msra.mxu0 0.0
    %1329 = vmatpush.xpose.msra.mxu0 0.0
    %1330 = vmatpush.xpose.msra.mxu0 0.0
    %1331 = vmatpush.xpose.msra.mxu0 0.0
    %1332 = vmatpush.xpose.msra.mxu0 %v1315
    %1333 = vmatmul.f32.gmra.mxu0 %v1313
    %v1334 = vpop.f32.mrf.mxu0
    %v1335 = vadd.f32 0.0, %v1334
    %1336 = vdwg.mxu0
    %1338 = vrot.lane.b32.xlu0 %v1170, 120
    %v1339 = vpop.permute.xlu0 %1338
    %v1340 = vsel %vm198, %v1170, 0
    %v1342 = vsel %vm198, %v1339, 0
    %1344 = vmatpush.xpose.msra.mxu0 0.0
    %1345 = vmatpush.xpose.msra.mxu0 0.0
    %1346 = vmatpush.xpose.msra.mxu0 0.0
    %1347 = vmatpush.xpose.msra.mxu0 0.0
    %1348 = vmatpush.xpose.msra.mxu0 0.0
    %1349 = vmatpush.xpose.msra.mxu0 0.0
    %1350 = vmatpush.xpose.msra.mxu0 0.0
    %1351 = vmatpush.xpose.msra.mxu0 0.0
    %1352 = vmatpush.xpose.msra.mxu0 0.0
    %1353 = vmatpush.xpose.msra.mxu0 0.0
    %1354 = vmatpush.xpose.msra.mxu0 0.0
    %1355 = vmatpush.xpose.msra.mxu0 0.0
    %1356 = vmatpush.xpose.msra.mxu0 0.0
    %1357 = vmatpush.xpose.msra.mxu0 0.0
    %1358 = vmatpush.xpose.msra.mxu0 0.0
    %1359 = vmatpush.xpose.msra.mxu0 %v1342
    %1360 = vmatmul.f32.gmra.mxu0 %v1340
    %v1361 = vpop.f32.mrf.mxu0
    %v1362 = vadd.f32 0.0, %v1361
    %1363 = vdwg.mxu0
    %1365 = vrot.lane.b32.xlu0 %v1173, 120
    %v1366 = vpop.permute.xlu0 %1365
    %v1367 = vsel %vm198, %v1173, 0
    %v1369 = vsel %vm198, %v1366, 0
    %1371 = vmatpush.xpose.msra.mxu0 0.0
    %1372 = vmatpush.xpose.msra.mxu0 0.0
    %1373 = vmatpush.xpose.msra.mxu0 0.0
    %1374 = vmatpush.xpose.msra.mxu0 0.0
    %1375 = vmatpush.xpose.msra.mxu0 0.0
    %1376 = vmatpush.xpose.msra.mxu0 0.0
    %1377 = vmatpush.xpose.msra.mxu0 0.0
    %1378 = vmatpush.xpose.msra.mxu0 0.0
    %1379 = vmatpush.xpose.msra.mxu0 0.0
    %1380 = vmatpush.xpose.msra.mxu0 0.0
    %1381 = vmatpush.xpose.msra.mxu0 0.0
    %1382 = vmatpush.xpose.msra.mxu0 0.0
    %1383 = vmatpush.xpose.msra.mxu0 0.0
    %1384 = vmatpush.xpose.msra.mxu0 0.0
    %1385 = vmatpush.xpose.msra.mxu0 0.0
    %1386 = vmatpush.xpose.msra.mxu0 %v1369
    %1387 = vmatmul.f32.gmra.mxu0 %v1367
    %v1388 = vpop.f32.mrf.mxu0
    %v1389 = vadd.f32 0.0, %v1388
    %1390 = vdwg.mxu0
    %v1391 = vmul.f32 %v1200, %v55
    %v1392 = vmul.f32 %v1227, %v56
    %v1393 = vmul.f32 %v1254, %v55
    %v1394 = vmul.f32 %v1281, %v56
    %v1395 = vmul.f32 %v1308, %v55
    %v1396 = vmul.f32 %v1335, %v56
    %v1397 = vmul.f32 %v1362, %v55
    %v1398 = vmul.f32 %v1389, %v56
    %v1399 = vsel %vm412, -1e+20, %v1391
    %v1400 = vsel %vm413, -1e+20, %v1392
    %v1401 = vsel %vm412, -1e+20, %v1393
    %v1402 = vsel %vm413, -1e+20, %v1394
    %v1403 = vsel %vm412, -1e+20, %v1395
    %v1404 = vsel %vm413, -1e+20, %v1396
    %v1405 = vsel %vm412, -1e+20, %v1397
    %v1406 = vsel %vm413, -1e+20, %v1398
    %v1407 = vsel %vm198, %v1399, -inf
    %1408 = vmax.xlane.f32.xlu0 %v1407
    %v1409 = vpop.xlane.xlu0 %1408
    %v1410 = vsel %vm198, %v1400, -inf
    %1411 = vmax.xlane.f32.xlu0 %v1410
    %v1412 = vpop.xlane.xlu0 %1411
    %v1413 = vsel %vm198, %v1401, -inf
    %1414 = vmax.xlane.f32.xlu0 %v1413
    %v1415 = vpop.xlane.xlu0 %1414
    %v1416 = vsel %vm198, %v1402, -inf
    %1417 = vmax.xlane.f32.xlu0 %v1416
    %v1418 = vpop.xlane.xlu0 %1417
    %v1419 = vsel %vm198, %v1403, -inf
    %1420 = vmax.xlane.f32.xlu0 %v1419
    %v1421 = vpop.xlane.xlu0 %1420
    %v1422 = vsel %vm198, %v1404, -inf
    %1423 = vmax.xlane.f32.xlu0 %v1422
    %v1424 = vpop.xlane.xlu0 %1423
    %v1425 = vsel %vm198, %v1405, -inf
    %1426 = vmax.xlane.f32.xlu0 %v1425
    %v1427 = vpop.xlane.xlu0 %1426
    %v1428 = vsel %vm198, %v1406, -inf
    %1429 = vmax.xlane.f32.xlu0 %v1428
    %v1430 = vpop.xlane.xlu0 %1429
    %v1431 = vsub.f32 %v1399, %v1409
    %v1432 = vsub.f32 %v1400, %v1412
    %v1433 = vsub.f32 %v1401, %v1415
    %v1434 = vsub.f32 %v1402, %v1418
    %v1435 = vsub.f32 %v1403, %v1421
    %v1436 = vsub.f32 %v1404, %v1424
    %v1437 = vsub.f32 %v1405, %v1427
    %v1438 = vsub.f32 %v1406, %v1430
    %v1439 = vmul.f32 %v1431, 1.442695
    %v1440 = vpow.pop %v1439
    %v1441 = vmul.f32 %v1432, 1.442695
    %v1442 = vpow.pop %v1441
    %v1443 = vmul.f32 %v1433, 1.442695
    %v1444 = vpow.pop %v1443
    %v1445 = vmul.f32 %v1434, 1.442695
    %v1446 = vpow.pop %v1445
    %v1447 = vmul.f32 %v1435, 1.442695
    %v1448 = vpow.pop %v1447
    %v1449 = vmul.f32 %v1436, 1.442695
    %v1450 = vpow.pop %v1449
    %v1451 = vmul.f32 %v1437, 1.442695
    %v1452 = vpow.pop %v1451
    %v1453 = vmul.f32 %v1438, 1.442695
    %v1454 = vpow.pop %v1453
    %v1455 = vsel %vm198, %v1440, 0.0
    %1456 = vadd.xlane.f32.xlu0 %v1455
    %v1457 = vpop.xlane.xlu0 %1456
    %v1458 = vsel %vm198, %v1442, 0.0
    %1459 = vadd.xlane.f32.xlu0 %v1458
    %v1460 = vpop.xlane.xlu0 %1459
    %v1461 = vsel %vm198, %v1444, 0.0
    %1462 = vadd.xlane.f32.xlu0 %v1461
    %v1463 = vpop.xlane.xlu0 %1462
    %v1464 = vsel %vm198, %v1446, 0.0
    %1465 = vadd.xlane.f32.xlu0 %v1464
    %v1466 = vpop.xlane.xlu0 %1465
    %v1467 = vsel %vm198, %v1448, 0.0
    %1468 = vadd.xlane.f32.xlu0 %v1467
    %v1469 = vpop.xlane.xlu0 %1468
    %v1470 = vsel %vm198, %v1450, 0.0
    %1471 = vadd.xlane.f32.xlu0 %v1470
    %v1472 = vpop.xlane.xlu0 %1471
    %v1473 = vsel %vm198, %v1452, 0.0
    %1474 = vadd.xlane.f32.xlu0 %v1473
    %v1475 = vpop.xlane.xlu0 %1474
    %v1476 = vsel %vm198, %v1454, 0.0
    %1477 = vadd.xlane.f32.xlu0 %v1476
    %v1478 = vpop.xlane.xlu0 %1477
    %v1479 = vrcp.pop %v1457
    %v1480 = vrcp.pop %v1460
    %v1481 = vrcp.pop %v1463
    %v1482 = vrcp.pop %v1466
    %v1483 = vrcp.pop %v1469
    %v1484 = vrcp.pop %v1472
    %v1485 = vrcp.pop %v1475
    %v1486 = vrcp.pop %v1478
    %v1487 = vmul.f32 %v1440, %v1479
    %v1488 = vmul.f32 %v1442, %v1480
    %v1489 = vmul.f32 %v1444, %v1481
    %v1490 = vmul.f32 %v1446, %v1482
    %v1491 = vmul.f32 %v1448, %v1483
    %v1492 = vmul.f32 %v1450, %v1484
    %v1493 = vmul.f32 %v1452, %v1485
    %v1494 = vmul.f32 %v1454, %v1486
    %1495 = vrot.lane.b32.xlu0 %v1101, 112
    %v1496 = vpop.permute.xlu0 %1495
    %v1499 = vsel %vm198, %v1487, 0
    %1501 = vmatpush.msra.mxu0 0.0
    %1502 = vmatpush.msra.mxu0 0.0
    %1503 = vmatpush.msra.mxu0 0.0
    %1504 = vmatpush.msra.mxu0 0.0
    %1505 = vmatpush.msra.mxu0 0.0
    %1506 = vmatpush.msra.mxu0 0.0
    %1507 = vmatpush.msra.mxu0 0.0
    %1508 = vmatpush.msra.mxu0 0.0
    %1509 = vmatpush.msra.mxu0 0.0
    %1510 = vmatpush.msra.mxu0 0.0
    %1511 = vmatpush.msra.mxu0 0.0
    %1512 = vmatpush.msra.mxu0 0.0
    %1513 = vmatpush.msra.mxu0 0.0
    %1514 = vmatpush.msra.mxu0 0.0
    %1515 = vmatpush.msra.mxu0 0.0
    %1516 = vmatpush.msra.mxu0 %v1496
    %1517 = vmatmul.f32.gmra.mxu0 %v1499
    %v1518 = vpop.f32.mrf.mxu0
    %v1519 = vadd.f32 0.0, %v1518
    %1520 = vdwg.mxu0
    %1521 = vrot.lane.b32.xlu0 %v1104, 112
    %v1522 = vpop.permute.xlu0 %1521
    %v1525 = vsel %vm198, %v1488, 0
    %1527 = vmatpush.msra.mxu0 0.0
    %1528 = vmatpush.msra.mxu0 0.0
    %1529 = vmatpush.msra.mxu0 0.0
    %1530 = vmatpush.msra.mxu0 0.0
    %1531 = vmatpush.msra.mxu0 0.0
    %1532 = vmatpush.msra.mxu0 0.0
    %1533 = vmatpush.msra.mxu0 0.0
    %1534 = vmatpush.msra.mxu0 0.0
    %1535 = vmatpush.msra.mxu0 0.0
    %1536 = vmatpush.msra.mxu0 0.0
    %1537 = vmatpush.msra.mxu0 0.0
    %1538 = vmatpush.msra.mxu0 0.0
    %1539 = vmatpush.msra.mxu0 0.0
    %1540 = vmatpush.msra.mxu0 0.0
    %1541 = vmatpush.msra.mxu0 0.0
    %1542 = vmatpush.msra.mxu0 %v1522
    %1543 = vmatmul.f32.gmra.mxu0 %v1525
    %v1544 = vpop.f32.mrf.mxu0
    %v1545 = vadd.f32 0.0, %v1544
    %1546 = vdwg.mxu0
    %1547 = vrot.lane.b32.xlu0 %v1124, 112
    %v1548 = vpop.permute.xlu0 %1547
    %v1551 = vsel %vm198, %v1489, 0
    %1553 = vmatpush.msra.mxu0 0.0
    %1554 = vmatpush.msra.mxu0 0.0
    %1555 = vmatpush.msra.mxu0 0.0
    %1556 = vmatpush.msra.mxu0 0.0
    %1557 = vmatpush.msra.mxu0 0.0
    %1558 = vmatpush.msra.mxu0 0.0
    %1559 = vmatpush.msra.mxu0 0.0
    %1560 = vmatpush.msra.mxu0 0.0
    %1561 = vmatpush.msra.mxu0 0.0
    %1562 = vmatpush.msra.mxu0 0.0
    %1563 = vmatpush.msra.mxu0 0.0
    %1564 = vmatpush.msra.mxu0 0.0
    %1565 = vmatpush.msra.mxu0 0.0
    %1566 = vmatpush.msra.mxu0 0.0
    %1567 = vmatpush.msra.mxu0 0.0
    %1568 = vmatpush.msra.mxu0 %v1548
    %1569 = vmatmul.f32.gmra.mxu0 %v1551
    %v1570 = vpop.f32.mrf.mxu0
    %v1571 = vadd.f32 0.0, %v1570
    %1572 = vdwg.mxu0
    %1573 = vrot.lane.b32.xlu0 %v1127, 112
    %v1574 = vpop.permute.xlu0 %1573
    %v1577 = vsel %vm198, %v1490, 0
    %1579 = vmatpush.msra.mxu0 0.0
    %1580 = vmatpush.msra.mxu0 0.0
    %1581 = vmatpush.msra.mxu0 0.0
    %1582 = vmatpush.msra.mxu0 0.0
    %1583 = vmatpush.msra.mxu0 0.0
    %1584 = vmatpush.msra.mxu0 0.0
    %1585 = vmatpush.msra.mxu0 0.0
    %1586 = vmatpush.msra.mxu0 0.0
    %1587 = vmatpush.msra.mxu0 0.0
    %1588 = vmatpush.msra.mxu0 0.0
    %1589 = vmatpush.msra.mxu0 0.0
    %1590 = vmatpush.msra.mxu0 0.0
    %1591 = vmatpush.msra.mxu0 0.0
    %1592 = vmatpush.msra.mxu0 0.0
    %1593 = vmatpush.msra.mxu0 0.0
    %1594 = vmatpush.msra.mxu0 %v1574
    %1595 = vmatmul.f32.gmra.mxu0 %v1577
    %v1596 = vpop.f32.mrf.mxu0
    %v1597 = vadd.f32 0.0, %v1596
    %1598 = vdwg.mxu0
    %1599 = vrot.lane.b32.xlu0 %v1147, 112
    %v1600 = vpop.permute.xlu0 %1599
    %v1603 = vsel %vm198, %v1491, 0
    %1605 = vmatpush.msra.mxu0 0.0
    %1606 = vmatpush.msra.mxu0 0.0
    %1607 = vmatpush.msra.mxu0 0.0
    %1608 = vmatpush.msra.mxu0 0.0
    %1609 = vmatpush.msra.mxu0 0.0
    %1610 = vmatpush.msra.mxu0 0.0
    %1611 = vmatpush.msra.mxu0 0.0
    %1612 = vmatpush.msra.mxu0 0.0
    %1613 = vmatpush.msra.mxu0 0.0
    %1614 = vmatpush.msra.mxu0 0.0
    %1615 = vmatpush.msra.mxu0 0.0
    %1616 = vmatpush.msra.mxu0 0.0
    %1617 = vmatpush.msra.mxu0 0.0
    %1618 = vmatpush.msra.mxu0 0.0
    %1619 = vmatpush.msra.mxu0 0.0
    %1620 = vmatpush.msra.mxu0 %v1600
    %1621 = vmatmul.f32.gmra.mxu0 %v1603
    %v1622 = vpop.f32.mrf.mxu0
    %v1623 = vadd.f32 0.0, %v1622
    %1624 = vdwg.mxu0
    %1625 = vrot.lane.b32.xlu0 %v1150, 112
    %v1626 = vpop.permute.xlu0 %1625
    %v1629 = vsel %vm198, %v1492, 0
    %1631 = vmatpush.msra.mxu0 0.0
    %1632 = vmatpush.msra.mxu0 0.0
    %1633 = vmatpush.msra.mxu0 0.0
    %1634 = vmatpush.msra.mxu0 0.0
    %1635 = vmatpush.msra.mxu0 0.0
    %1636 = vmatpush.msra.mxu0 0.0
    %1637 = vmatpush.msra.mxu0 0.0
    %1638 = vmatpush.msra.mxu0 0.0
    %1639 = vmatpush.msra.mxu0 0.0
    %1640 = vmatpush.msra.mxu0 0.0
    %1641 = vmatpush.msra.mxu0 0.0
    %1642 = vmatpush.msra.mxu0 0.0
    %1643 = vmatpush.msra.mxu0 0.0
    %1644 = vmatpush.msra.mxu0 0.0
    %1645 = vmatpush.msra.mxu0 0.0
    %1646 = vmatpush.msra.mxu0 %v1626
    %1647 = vmatmul.f32.gmra.mxu0 %v1629
    %v1648 = vpop.f32.mrf.mxu0
    %v1649 = vadd.f32 0.0, %v1648
    %1650 = vdwg.mxu0
    %1651 = vrot.lane.b32.xlu0 %v1170, 112
    %v1652 = vpop.permute.xlu0 %1651
    %v1655 = vsel %vm198, %v1493, 0
    %1657 = vmatpush.msra.mxu0 0.0
    %1658 = vmatpush.msra.mxu0 0.0
    %1659 = vmatpush.msra.mxu0 0.0
    %1660 = vmatpush.msra.mxu0 0.0
    %1661 = vmatpush.msra.mxu0 0.0
    %1662 = vmatpush.msra.mxu0 0.0
    %1663 = vmatpush.msra.mxu0 0.0
    %1664 = vmatpush.msra.mxu0 0.0
    %1665 = vmatpush.msra.mxu0 0.0
    %1666 = vmatpush.msra.mxu0 0.0
    %1667 = vmatpush.msra.mxu0 0.0
    %1668 = vmatpush.msra.mxu0 0.0
    %1669 = vmatpush.msra.mxu0 0.0
    %1670 = vmatpush.msra.mxu0 0.0
    %1671 = vmatpush.msra.mxu0 0.0
    %1672 = vmatpush.msra.mxu0 %v1652
    %1673 = vmatmul.f32.gmra.mxu0 %v1655
    %v1674 = vpop.f32.mrf.mxu0
    %v1675 = vadd.f32 0.0, %v1674
    %1676 = vdwg.mxu0
    %1677 = vrot.lane.b32.xlu0 %v1173, 112
    %v1678 = vpop.permute.xlu0 %1677
    %v1681 = vsel %vm198, %v1494, 0
    %1683 = vmatpush.msra.mxu0 0.0
    %1684 = vmatpush.msra.mxu0 0.0
    %1685 = vmatpush.msra.mxu0 0.0
    %1686 = vmatpush.msra.mxu0 0.0
    %1687 = vmatpush.msra.mxu0 0.0
    %1688 = vmatpush.msra.mxu0 0.0
    %1689 = vmatpush.msra.mxu0 0.0
    %1690 = vmatpush.msra.mxu0 0.0
    %1691 = vmatpush.msra.mxu0 0.0
    %1692 = vmatpush.msra.mxu0 0.0
    %1693 = vmatpush.msra.mxu0 0.0
    %1694 = vmatpush.msra.mxu0 0.0
    %1695 = vmatpush.msra.mxu0 0.0
    %1696 = vmatpush.msra.mxu0 0.0
    %1697 = vmatpush.msra.mxu0 0.0
    %1698 = vmatpush.msra.mxu0 %v1678
    %1699 = vmatmul.f32.gmra.mxu0 %v1681
    %v1700 = vpop.f32.mrf.mxu0
    %v1701 = vadd.f32 0.0, %v1700
    %1702 = vdwg.mxu0
    %v1704 = vsel %vm198, %v1519, 0
    %v1707 = vsel %vm198, %v1545, 0
    %1709 = vmatpush.msra.mxu0 0.0
    %1710 = vmatpush.msra.mxu0 0.0
    %1711 = vmatpush.msra.mxu0 0.0
    %1712 = vmatpush.msra.mxu0 0.0
    %1713 = vmatpush.msra.mxu0 0.0
    %1714 = vmatpush.msra.mxu0 0.0
    %1715 = vmatpush.msra.mxu0 0.0
    %1716 = vmatpush.msra.mxu0 0.0
    %1717 = vmatpush.msra.mxu0 0.0
    %1718 = vmatpush.msra.mxu0 0.0
    %1719 = vmatpush.msra.mxu0 0.0
    %1720 = vmatpush.msra.mxu0 0.0
    %1721 = vmatpush.msra.mxu0 0.0
    %1722 = vmatpush.msra.mxu0 0.0
    %1723 = vmatpush.msra.mxu0 0.0
    %1724 = vmatpush.msra.mxu0 %v1051
    %1725 = vmatmul.f32.gmra.mxu0 %v1704
    %v1726 = vpop.f32.mrf.mxu0
    %v1727 = vadd.f32 0.0, %v1726
    %1728 = vmatmul.f32.gmra.mxu0 %v1707
    %v1729 = vpop.f32.mrf.mxu0
    %v1730 = vadd.f32 0.0, %v1729
    %1731 = vdwg.mxu0
    %v1733 = vsel %vm198, %v1571, 0
    %v1736 = vsel %vm198, %v1597, 0
    %1738 = vmatpush.msra.mxu0 0.0
    %1739 = vmatpush.msra.mxu0 0.0
    %1740 = vmatpush.msra.mxu0 0.0
    %1741 = vmatpush.msra.mxu0 0.0
    %1742 = vmatpush.msra.mxu0 0.0
    %1743 = vmatpush.msra.mxu0 0.0
    %1744 = vmatpush.msra.mxu0 0.0
    %1745 = vmatpush.msra.mxu0 0.0
    %1746 = vmatpush.msra.mxu0 0.0
    %1747 = vmatpush.msra.mxu0 0.0
    %1748 = vmatpush.msra.mxu0 0.0
    %1749 = vmatpush.msra.mxu0 0.0
    %1750 = vmatpush.msra.mxu0 0.0
    %1751 = vmatpush.msra.mxu0 0.0
    %1752 = vmatpush.msra.mxu0 0.0
    %1753 = vmatpush.msra.mxu0 %v1052
    %1754 = vmatmul.f32.gmra.mxu0 %v1733
    %v1755 = vpop.f32.mrf.mxu0
    %v1756 = vadd.f32 0.0, %v1755
    %1757 = vmatmul.f32.gmra.mxu0 %v1736
    %v1758 = vpop.f32.mrf.mxu0
    %v1759 = vadd.f32 0.0, %v1758
    %1760 = vdwg.mxu0
    %v1762 = vsel %vm198, %v1623, 0
    %v1765 = vsel %vm198, %v1649, 0
    %1767 = vmatpush.msra.mxu0 0.0
    %1768 = vmatpush.msra.mxu0 0.0
    %1769 = vmatpush.msra.mxu0 0.0
    %1770 = vmatpush.msra.mxu0 0.0
    %1771 = vmatpush.msra.mxu0 0.0
    %1772 = vmatpush.msra.mxu0 0.0
    %1773 = vmatpush.msra.mxu0 0.0
    %1774 = vmatpush.msra.mxu0 0.0
    %1775 = vmatpush.msra.mxu0 0.0
    %1776 = vmatpush.msra.mxu0 0.0
    %1777 = vmatpush.msra.mxu0 0.0
    %1778 = vmatpush.msra.mxu0 0.0
    %1779 = vmatpush.msra.mxu0 0.0
    %1780 = vmatpush.msra.mxu0 0.0
    %1781 = vmatpush.msra.mxu0 0.0
    %1782 = vmatpush.msra.mxu0 %v1053
    %1783 = vmatmul.f32.gmra.mxu0 %v1762
    %v1784 = vpop.f32.mrf.mxu0
    %v1785 = vadd.f32 0.0, %v1784
    %1786 = vmatmul.f32.gmra.mxu0 %v1765
    %v1787 = vpop.f32.mrf.mxu0
    %v1788 = vadd.f32 0.0, %v1787
    %1789 = vdwg.mxu0
    %v1791 = vsel %vm198, %v1675, 0
    %v1794 = vsel %vm198, %v1701, 0
    %1796 = vmatpush.msra.mxu0 0.0
    %1797 = vmatpush.msra.mxu0 0.0
    %1798 = vmatpush.msra.mxu0 0.0
    %1799 = vmatpush.msra.mxu0 0.0
    %1800 = vmatpush.msra.mxu0 0.0
    %1801 = vmatpush.msra.mxu0 0.0
    %1802 = vmatpush.msra.mxu0 0.0
    %1803 = vmatpush.msra.mxu0 0.0
    %1804 = vmatpush.msra.mxu0 0.0
    %1805 = vmatpush.msra.mxu0 0.0
    %1806 = vmatpush.msra.mxu0 0.0
    %1807 = vmatpush.msra.mxu0 0.0
    %1808 = vmatpush.msra.mxu0 0.0
    %1809 = vmatpush.msra.mxu0 0.0
    %1810 = vmatpush.msra.mxu0 0.0
    %1811 = vmatpush.msra.mxu0 %v1054
    %1812 = vmatmul.f32.gmra.mxu0 %v1791
    %v1813 = vpop.f32.mrf.mxu0
    %v1814 = vadd.f32 0.0, %v1813
    %1815 = vmatmul.f32.gmra.mxu0 %v1794
    %v1816 = vpop.f32.mrf.mxu0
    %v1817 = vadd.f32 0.0, %v1816
    %1818 = vdwg.mxu0
    %v1819 = vsel %vm96, %v1727, 0.0
    %v1820 = vsel %vm96, %v1756, 0.0
    %v1821 = vadd.f32 %v1819, %v1820
    %v1822 = vsel %vm96, %v1785, 0.0
    %v1823 = vadd.f32 %v1821, %v1822
    %v1824 = vsel %vm96, %v1814, 0.0
    %v1825 = vadd.f32 %v1823, %v1824
    %v1826 = vsel %vm96, %v1730, 0.0
    %v1827 = vsel %vm96, %v1759, 0.0
    %v1828 = vadd.f32 %v1826, %v1827
    %v1829 = vsel %vm96, %v1788, 0.0
    %v1830 = vadd.f32 %v1828, %v1829
    %v1831 = vsel %vm96, %v1817, 0.0
    %v1832 = vadd.f32 %v1830, %v1831
    %v1833 = vperm.slane %v1070, 0
    %v1834 = vadd.f32 %v1825, %v1833
    %v1835 = vadd.f32 %v1832, %v1833
    %v1836 = vadd.f32 %v1834, %v1031
    %v1837 = vadd.f32 %v1835, %v1032
    %v1838 = vsel %vm96, %v1836, 0.0
    %1839 = vadd.xlane.f32.xlu0 %v1838
    %v1840 = vpop.xlane.xlu0 %1839
    %v1841 = vsel %vm96, %v1837, 0.0
    %1842 = vadd.xlane.f32.xlu0 %v1841
    %v1843 = vpop.xlane.xlu0 %1842
    %v1844 = vmul.f32 %v1840, %v873
    %v1845 = vmul.f32 %v1843, %v873
    %v1846 = vsub.f32 %v1836, %v1844
    %v1847 = vsub.f32 %v1837, %v1845
    %v1848 = vmul.f32 %v1846, %v1846
    %v1849 = vmul.f32 %v1847, %v1847
    %v1850 = vsel %vm96, %v1848, 0.0
    %1851 = vadd.xlane.f32.xlu0 %v1850
    %v1852 = vpop.xlane.xlu0 %1851
    %v1853 = vsel %vm96, %v1849, 0.0
    %1854 = vadd.xlane.f32.xlu0 %v1853
    %v1855 = vpop.xlane.xlu0 %1854
    %v1856 = vmul.f32 %v1852, %v873
    %v1857 = vmul.f32 %v1855, %v873
    %v1858 = vadd.f32 %v1856, 1e-05
    %v1859 = vadd.f32 %v1857, 1e-05
    %v1860 = vrsqrt.pop %v1858
    %v1861 = vmul.f32 %v1860, %v1858
    %v1862 = vmul.f32 %v1861, %v1860
    %v1863 = vmul.f32 0.5, %v1862
    %v1864 = vsub.f32 1.5, %v1863
    %v1865 = vmul.f32 %v1860, %v1864
    %vm1866 = vweird.f32 %v1858
    %vm1867 = vweird.f32 %v1860
    %vm1868 = vmor %vm1866, %vm1867
    %v1869 = vsel %vm1868, %v1860, %v1865
    %v1870 = vrsqrt.pop %v1859
    %v1871 = vmul.f32 %v1870, %v1859
    %v1872 = vmul.f32 %v1871, %v1870
    %v1873 = vmul.f32 0.5, %v1872
    %v1874 = vsub.f32 1.5, %v1873
    %v1875 = vmul.f32 %v1870, %v1874
    %vm1876 = vweird.f32 %v1859
    %vm1877 = vweird.f32 %v1870
    %vm1878 = vmor %vm1876, %vm1877
    %v1879 = vsel %vm1878, %v1870, %v1875
    %v1880 = vmul.f32 %v1846, %v1869
    %v1881 = vmul.f32 %v1847, %v1879
    %v1882 = vperm.slane %v1071, 0
    %v1883 = vmul.f32 %v1880, %v1882
    %v1884 = vmul.f32 %v1881, %v1882
    %v1885 = vperm.slane %v1072, 0
    %v1886 = vadd.f32 %v1883, %v1885
    %v1887 = vadd.f32 %v1884, %v1885
    %v1888 = vperm.slane %v1076, 0
    %v1890 = vsel %vm96, %v1886, 0
    %v1893 = vsel %vm96, %v1887, 0
    %1895 = vmatpush.msra.mxu0 0.0
    %1896 = vmatpush.msra.mxu0 0.0
    %1897 = vmatpush.msra.mxu0 0.0
    %1898 = vmatpush.msra.mxu0 0.0
    %1899 = vmatpush.msra.mxu0 0.0
    %1900 = vmatpush.msra.mxu0 0.0
    %1901 = vmatpush.msra.mxu0 0.0
    %1902 = vmatpush.msra.mxu0 0.0
    %1903 = vmatpush.msra.mxu0 0.0
    %1904 = vmatpush.msra.mxu0 0.0
    %1905 = vmatpush.msra.mxu0 0.0
    %1906 = vmatpush.msra.mxu0 0.0
    %1907 = vmatpush.msra.mxu0 %v1059
    %1908 = vmatpush.msra.mxu0 %v1058
    %1909 = vmatpush.msra.mxu0 %v1057
    %1910 = vmatpush.msra.mxu0 %v1056
    %1911 = vmatmul.f32.gmra.mxu0 %v1890
    %v1912 = vpop.f32.mrf.mxu0
    %v1913 = vadd.f32 %v1888, %v1912
    %1914 = vmatmul.f32.gmra.mxu0 %v1893
    %v1915 = vpop.f32.mrf.mxu0
    %v1916 = vadd.f32 %v1888, %v1915
    %1917 = vdwg.mxu0
    %v1918 = vmax.f32 %v1913, 0.0
    %v1919 = vmax.f32 %v1916, 0.0
    %v1920 = vperm.slane %v1075, 0
    %v1922 = vsel %vm951, %v1918, 0
    %v1925 = vsel %vm951, %v1919, 0
    %1927 = vmatpush.msra.mxu0 0.0
    %1928 = vmatpush.msra.mxu0 0.0
    %1929 = vmatpush.msra.mxu0 0.0
    %1930 = vmatpush.msra.mxu0 0.0
    %1931 = vmatpush.msra.mxu0 0.0
    %1932 = vmatpush.msra.mxu0 0.0
    %1933 = vmatpush.msra.mxu0 0.0
    %1934 = vmatpush.msra.mxu0 0.0
    %1935 = vmatpush.msra.mxu0 %v1068
    %1936 = vmatpush.msra.mxu0 %v1067
    %1937 = vmatpush.msra.mxu0 %v1066
    %1938 = vmatpush.msra.mxu0 %v1065
    %1939 = vmatpush.msra.mxu0 %v1064
    %1940 = vmatpush.msra.mxu0 %v1063
    %1941 = vmatpush.msra.mxu0 %v1062
    %1942 = vmatpush.msra.mxu0 %v1061
    %1943 = vmatmul.f32.gmra.mxu0 %v1922
    %v1944 = vpop.f32.mrf.mxu0
    %v1945 = vadd.f32 %v1920, %v1944
    %1946 = vmatmul.f32.gmra.mxu0 %v1925
    %v1947 = vpop.f32.mrf.mxu0
    %v1948 = vadd.f32 %v1920, %v1947
    %1949 = vdwg.mxu0
    %v1950 = vadd.f32 %v1945, %v1886
    %v1951 = vadd.f32 %v1948, %v1887
    %v1952 = vsel %vm96, %v1950, 0.0
    %1953 = vadd.xlane.f32.xlu0 %v1952
    %v1954 = vpop.xlane.xlu0 %1953
    %v1955 = vsel %vm96, %v1951, 0.0
    %1956 = vadd.xlane.f32.xlu0 %v1955
    %v1957 = vpop.xlane.xlu0 %1956
    %v1958 = vmul.f32 %v1954, %v873
    %v1959 = vmul.f32 %v1957, %v873
    %v1960 = vsub.f32 %v1950, %v1958
    %v1961 = vsub.f32 %v1951, %v1959
    %v1962 = vmul.f32 %v1960, %v1960
    %v1963 = vmul.f32 %v1961, %v1961
    %v1964 = vsel %vm96, %v1962, 0.0
    %1965 = vadd.xlane.f32.xlu0 %v1964
    %v1966 = vpop.xlane.xlu0 %1965
    %v1967 = vsel %vm96, %v1963, 0.0
    %1968 = vadd.xlane.f32.xlu0 %v1967
    %v1969 = vpop.xlane.xlu0 %1968
    %v1970 = vmul.f32 %v1966, %v873
    %v1971 = vmul.f32 %v1969, %v873
    %v1972 = vadd.f32 %v1970, 1e-05
    %v1973 = vadd.f32 %v1971, 1e-05
    %v1974 = vrsqrt.pop %v1972
    %v1975 = vmul.f32 %v1974, %v1972
    %v1976 = vmul.f32 %v1975, %v1974
    %v1977 = vmul.f32 0.5, %v1976
    %v1978 = vsub.f32 1.5, %v1977
    %v1979 = vmul.f32 %v1974, %v1978
    %vm1980 = vweird.f32 %v1972
    %vm1981 = vweird.f32 %v1974
    %vm1982 = vmor %vm1980, %vm1981
    %v1983 = vsel %vm1982, %v1974, %v1979
    %v1984 = vrsqrt.pop %v1973
    %v1985 = vmul.f32 %v1984, %v1973
    %v1986 = vmul.f32 %v1985, %v1984
    %v1987 = vmul.f32 0.5, %v1986
    %v1988 = vsub.f32 1.5, %v1987
    %v1989 = vmul.f32 %v1984, %v1988
    %vm1990 = vweird.f32 %v1973
    %vm1991 = vweird.f32 %v1984
    %vm1992 = vmor %vm1990, %vm1991
    %v1993 = vsel %vm1992, %v1984, %v1989
    %v1994 = vmul.f32 %v1960, %v1983
    %v1995 = vmul.f32 %v1961, %v1993
    %v1996 = vperm.slane %v1073, 0
    %v1997 = vmul.f32 %v1994, %v1996
    %v1998 = vmul.f32 %v1995, %v1996
    %v1999 = vperm.slane %v1074, 0
    %v2000 = vadd.f32 %v1997, %v1999
    %v2001 = vadd.f32 %v1998, %v1999
    %2002 = vst.msk [vmem:[#allocation2] sm:$0xff] %vm96, %v2000
    %2003 = vst.msk [vmem:[#allocation2 + $0x8] sm:$0xff] %vm96, %v2001
    // Predicated region
    $region34: #{encoder_forward.1} parent=1 // pred_check
      _
    $region35: #{encoder_forward.1} parent=1 // pred_check_branch
      %2005 = sbr.rel (0) target = $region37
    $region36: #{encoder_forward.1} parent=1 // pred_region
      %2007 = vsyncadd [#allocation3], 0
      %s2008 = sshll.u32 [#allocation2], 4
      %s2009 = int_to_ptr.vmem [resolvable:$true] %s2008
      %s2010 = sshll.u32 %s8, 4
      %s2011 = int_to_ptr.hbm [resolvable:$true] %s2010
      %2016 = dma.vmem_to_hbm [thread:$0]  %s2009, 256, %s2011, [#allocation3], 128, 128, 8
    $region37: #{encoder_forward.1} parent=1 // pred_fallthru
      _
    // Predicated region
    $region38: #{encoder_forward.1} parent=1 // pred_check
      _
    $region39: #{encoder_forward.1} parent=1 // pred_check_branch
      %2018 = sbr.rel (0) target = $region41
    $region40: #{encoder_forward.1} parent=1 // pred_region
      %2020 = dma.done [#allocation3], 256
    $region41: #{encoder_forward.1} parent=1 // pred_fallthru
      _
    %2021 = vsyncpa [#allocation3], 1

</llo_original>
